<compile_context>
chip_gen: v7x
topology: tpu7x:2x2x1
jax: 0.10.0
libtpu: 0.0.40
codegen_flags: <defaults>
</compile_context>

<pallas_src>
import math
from functools import partial

import jax
import jax.numpy as jnp
from jax import lax
from jax.experimental import pallas as pl
from jax.experimental.pallas import tpu as pltpu


def _fast_sin(x):
    """sin(x) for bounded |x| (here |x| <= max(H, W) + pi/2).

    Single Cody-Waite reduction modulo pi + degree-9 odd polynomial on
    [-pi/2, pi/2].  Max abs error ~5e-6 for |x| <= 1e3 -- well below the 1e-4
    comparison tolerance.  All ops are plain VPU f32 (no generic sin lowering).
    """
    inv_pi = 0.3183098861837907
    pi_hi = 3.140625              # exactly representable in f32
    pi_lo = 9.6765358979e-4       # pi - pi_hi
    k = jnp.floor(x * inv_pi + 0.5)           # nearest multiple of pi
    r = (x - k * pi_hi) - k * pi_lo           # reduced arg in ~[-pi/2, pi/2]
    parity = k - 2.0 * jnp.floor(k * 0.5)     # k mod 2 (exact: k is small integer)
    sign = 1.0 - 2.0 * parity                 # (-1)^k
    r2 = r * r
    # Taylor deg-9 odd polynomial; |err| <= (pi/2)^11 / 11! ~ 3.6e-6 on [-pi/2, pi/2].
    p = 2.7557319e-06
    p = p * r2 - 1.9841270e-04
    p = p * r2 + 8.3333333e-03
    p = p * r2 - 1.6666667e-01
    return sign * (r + r * r2 * p)


def _pos_embed_sine_kernel(nm_ref, pick_w_ref, cum_w_ref, cum_h_ref, pick_h_ref,
                           out_ref, *, num_pos_feats, temperature, normalize,
                           scale, split_xy):
    F = num_pos_feats
    Bb = nm_ref.shape[0]
    eps = 1e-6

    # Per-channel inverse frequency & phase, shape (F, 1):
    #   inv_dim[c] = temperature ** (-2*(c//2)/F)
    #   phase[c]   = 0 for even c (sin), pi/2 for odd c (cos == sin(.+pi/2)).
    chan_f = lax.broadcasted_iota(jnp.int32, (F, 1), 0).astype(jnp.float32)
    half_idx = jnp.floor(chan_f * 0.5)
    inv_dim = jnp.exp(half_idx * (-2.0 * math.log(float(temperature)) / float(F)))
    phase = (chan_f - 2.0 * half_idx) * (math.pi / 2.0)

    def emit_y(b):
        nm_b = nm_ref[b]                                                    # (H, W) bf16
        # ay[h, p] = not_mask[b, h, p % W]  (columns replicated onto lanes)
        ay = jnp.dot(nm_b, pick_w_ref[...], preferred_element_type=jnp.float32)  # (H, HW)
        # y[p] = sum_{h <= p//W} not_mask[b, h, p % W]   (H-cumsum, flattened)
        y = jnp.sum(ay * cum_h_ref[...], axis=0, keepdims=True)            # (1, HW)
        if normalize:
            denom = jnp.sum(ay, axis=0, keepdims=True)     # = y_embed[H-1, p%W]
            y = y / (denom + eps) * scale
        return _fast_sin(y * inv_dim + phase)                               # (F, HW)

    def emit_x(b):
        nm_b = nm_ref[b]                                                    # (H, W) bf16
        # ax[h, p] = cumsum_W(not_mask)[b, h, p % W]
        ax = jnp.dot(nm_b, cum_w_ref[...], preferred_element_type=jnp.float32)   # (H, HW)
        # x[p] = ax[p//W, p]
        x = jnp.sum(ax * pick_h_ref[...], axis=0, keepdims=True)           # (1, HW)
        if normalize:
            row_tot = jnp.sum(nm_b.astype(jnp.float32), axis=1, keepdims=True)   # (H, 1)
            denom = jnp.sum(pick_h_ref[...] * row_tot, axis=0, keepdims=True)    # x_embed[p//W, W-1]
            x = x / (denom + eps) * scale
        return _fast_sin(x * inv_dim + phase)                               # (F, HW)

    if split_xy:
        half = pl.program_id(1)   # 0 -> y-channel block [0:F), 1 -> x-channel block [F:2F)

        @pl.when(half == 0)
        def _():
            def body(b, carry):
                out_ref[b, :, :] = emit_y(b)
                return carry
            lax.fori_loop(0, Bb, body, 0)

        @pl.when(half == 1)
        def _():
            def body(b, carry):
                out_ref[b, :, :] = emit_x(b)
                return carry
            lax.fori_loop(0, Bb, body, 0)
    else:
        def body(b, carry):
            out_ref[b, pl.ds(0, F), :] = emit_y(b)
            out_ref[b, pl.ds(F, F), :] = emit_x(b)
            return carry
        lax.fori_loop(0, Bb, body, 0)


def _chip_profile():
    """Best-effort (vmem_capacity_bytes, multi_tensorcore_per_chip)."""
    kind = ""
    try:
        kind = jax.devices()[0].device_kind.lower()
    except Exception:
        pass
    vmem_bytes = None
    try:
        vmem_bytes = int(pltpu.get_tpu_info().vmem_capacity_bytes)
    except Exception:
        pass
    if vmem_bytes is None:
        vmem_bytes = (64 << 20) if "v7" in kind else (128 << 20)
    # Chips whose grid "parallel" axes shard across >1 TensorCore (v7x, v4 megacore).
    multi_tc = ("v7" in kind) or ("v4" in kind)
    return vmem_bytes, multi_tc


def position_embedding_sine(mask, num_pos_feats=64, temperature=10000,
                            normalize=False, scale=None):
    """Forward of PositionEmbeddingSine.  mask: (B, H, W) bool (True = padding)."""
    if scale is not None and normalize is False:
        raise ValueError('normalize should be True if scale is passed')
    if scale is None:
        scale = 2 * math.pi
    B, H, W = mask.shape
    F = num_pos_feats
    HW = H * W

    # Exactness guard: cumsums are exact-integer f32 sums and the 0/1 matrices are
    # exact in bf16; both hold trivially while H*W stays modest.
    assert HW < (1 << 22), "H*W too large for this kernel's exact-arithmetic assumptions"

    # not_mask directly as bf16 (exact for 0/1): it is the MXU operand, no in-kernel
    # int8 -> f32 -> bf16 chain.
    nm_bf = jnp.logical_not(mask).astype(jnp.bfloat16)                      # (B, H, W)

    # Loop-invariant selection / cumsum matrices (resident across grid steps).
    # Exact integer p -> (h, w) decomposition (no float //, % in the kernel).
    p = jnp.arange(HW, dtype=jnp.int32)
    w_of_p = (p % W)[None, :]
    h_of_p = (p // W)[None, :]
    kw = jnp.arange(W, dtype=jnp.int32)[:, None]
    kh = jnp.arange(H, dtype=jnp.int32)[:, None]
    pick_w = (kw == w_of_p).astype(jnp.bfloat16)   # (W, HW): [k == p % W]
    cum_w = (kw <= w_of_p).astype(jnp.bfloat16)    # (W, HW): [k <= p % W]
    cum_h = (kh <= h_of_p).astype(jnp.float32)     # (H, HW): [h <= p // W]
    pick_h = (kh == h_of_p).astype(jnp.float32)    # (H, HW): [h == p // W]

    vmem_bytes, multi_tc = _chip_profile()

    # Per-grid-step output block budget: conservative on 64 MiB-VMEM chips (v7x),
    # generous on 128 MiB chips (fewer grid steps, longer unmasked store bursts).
    block_cap = (8 << 20) if vmem_bytes <= (64 << 20) else (28 << 20)

    half_block_bytes = F * HW * 4
    full_block_bytes = 2 * half_block_bytes

    # Split y/x channel halves onto a 2-wide parallel grid axis only when it buys
    # something: a second TensorCore, or a needed VMEM halving.  Requires F % 8 == 0
    # (half-block channel dim must be sublane aligned).
    split_xy = (F % 8 == 0) and (multi_tc or full_block_bytes > block_cap)

    per_b_bytes = half_block_bytes if split_xy else full_block_bytes
    bblk = B
    if multi_tc and B >= 2:
        bblk = max(1, B // 2)      # keep >= 2 batch blocks so both TCs pipeline full steps
    while bblk > 1 and (B % bblk != 0 or bblk * per_b_bytes > block_cap):
        bblk -= 1

    # Realistic VMEM request: double-buffered out block + in block + resident
    # constants + rough in-kernel temporaries, +25% headroom; capped at 3/4 of
    # physical VMEM (<= 48 MiB on v7x).
    const_bytes = 2 * W * HW * 2 + 2 * H * HW * 4
    in_bytes = 2 * bblk * H * W * 2
    out_bytes = 2 * bblk * per_b_bytes
    temp_bytes = (2 * H * HW + 3 * F * HW) * 4
    vmem_need = int(1.25 * (const_bytes + in_bytes + out_bytes + temp_bytes))
    vmem_limit = min(max(32 << 20, vmem_need), (vmem_bytes * 3) // 4)

    kernel = partial(_pos_embed_sine_kernel, num_pos_feats=F,
                     temperature=float(temperature), normalize=normalize,
                     scale=float(scale), split_xy=split_xy)

    if split_xy:
        grid = (B // bblk, 2)
        cmap = lambda i, j: (0, 0)
        in_specs = [pl.BlockSpec((bblk, H, W), lambda i, j: (i, 0, 0)),
                    pl.BlockSpec((W, HW), cmap),
                    pl.BlockSpec((W, HW), cmap),
                    pl.BlockSpec((H, HW), cmap),
                    pl.BlockSpec((H, HW), cmap)]
        out_specs = pl.BlockSpec((bblk, F, HW), lambda i, j: (i, j, 0))
        dim_sem = ("parallel", "parallel")
    else:
        grid = (B // bblk,)
        cmap = lambda i: (0, 0)
        in_specs = [pl.BlockSpec((bblk, H, W), lambda i: (i, 0, 0)),
                    pl.BlockSpec((W, HW), cmap),
                    pl.BlockSpec((W, HW), cmap),
                    pl.BlockSpec((H, HW), cmap),
                    pl.BlockSpec((H, HW), cmap)]
        out_specs = pl.BlockSpec((bblk, 2 * F, HW), lambda i: (i, 0, 0))
        dim_sem = ("parallel",)

    out_flat = pl.pallas_call(
        kernel,
        out_shape=jax.ShapeDtypeStruct((B, 2 * F, HW), jnp.float32),
        grid_spec=pltpu.PrefetchScalarGridSpec(
            num_scalar_prefetch=0,
            grid=grid,
            in_specs=in_specs,
            out_specs=out_specs,
        ),
        compiler_params=pltpu.CompilerParams(
            dimension_semantics=dim_sem,
            vmem_limit_bytes=int(vmem_limit),
        ),
    )(nm_bf, pick_w, cum_w, cum_h, pick_h)

    # Free (contiguous) reshape back to PyTorch's NCHW layout.
    return out_flat.reshape(B, 2 * F, H, W)


def _reference(mask, num_pos_feats=64, temperature=10000, normalize=False,
               scale=None):
    """Pure-JAX port of the PyTorch forward for verification."""
    if scale is None:
        scale = 2 * math.pi
    not_mask = (~mask).astype(jnp.float32)
    y_embed = jnp.cumsum(not_mask, axis=1)
    x_embed = jnp.cumsum(not_mask, axis=2)
    if normalize:
        eps = 1e-6
        y_embed = y_embed / (y_embed[:, -1:, :] + eps) * scale
        x_embed = x_embed / (x_embed[:, :, -1:] + eps) * scale
    dim_t = jnp.arange(num_pos_feats, dtype=jnp.float32)
    dim_t = temperature ** (2 * jnp.floor(dim_t / 2) / num_pos_feats)
    pos_x = x_embed[:, :, :, None] / dim_t
    pos_y = y_embed[:, :, :, None] / dim_t
    B, H, W, _ = pos_x.shape
    pos_x = jnp.stack((jnp.sin(pos_x[..., 0::2]), jnp.cos(pos_x[..., 1::2])),
                      axis=4).reshape(B, H, W, -1)
    pos_y = jnp.stack((jnp.sin(pos_y[..., 0::2]), jnp.cos(pos_y[..., 1::2])),
                      axis=4).reshape(B, H, W, -1)
    return jnp.concatenate((pos_y, pos_x), axis=3).transpose(0, 3, 1, 2)


if __name__ == "__main__":
    B, C, H, W = 2, 4, 16, 16
    num_pos_feats = 64

    key = jax.random.PRNGKey(0)
    # x (the image features) is only used for device/dtype in the original module.
    x = jax.random.normal(key, (B, C, H, W), dtype=jnp.float32)

    # Deterministic padding mask: batch 0 fully valid; batch 1 valid region 12x10.
    valid_h = jnp.array([H, 12], dtype=jnp.int32)
    valid_w = jnp.array([W, 10], dtype=jnp.int32)
    hh = jnp.arange(H)[None, :, None]
    ww = jnp.arange(W)[None, None, :]
    mask = (hh >= valid_h[:, None, None]) | (ww >= valid_w[:, None, None])  # (B,H,W) bool

    ok = True
    for normalize in (False, True):
        pos = position_embedding_sine(mask, num_pos_feats=num_pos_feats,
                                      normalize=normalize)
        pos = jax.block_until_ready(pos)
        ref = _reference(mask, num_pos_feats=num_pos_feats, normalize=normalize)
        if pos.shape != (B, 2 * num_pos_feats, H, W) or pos.dtype != jnp.float32:
            ok = False
        if not jnp.allclose(pos, ref, atol=1e-4, rtol=1e-4):
            ok = False

    if ok:
        print("KERNEL_OK")
</pallas_src>

<mosaic_0001>
module attributes {stable_mosaic.version = 11 : i64} {
  func.func @_pos_embed_sine_kernel(%arg0: i32, %arg1: memref<2x16x16xbf16, #tpu.memory_space<vmem>>, %arg2: memref<16x256xbf16, #tpu.memory_space<vmem>>, %arg3: memref<16x256xbf16, #tpu.memory_space<vmem>>, %arg4: memref<16x256xf32, #tpu.memory_space<vmem>>, %arg5: memref<16x256xf32, #tpu.memory_space<vmem>>, %arg6: memref<2x128x256xf32, #tpu.memory_space<vmem>>) attributes {dimension_semantics = [#tpu.dimension_semantics<parallel>], iteration_bounds = array<i64: 1>, scalar_prefetch = 0 : i64, scratch_operands = 0 : i64, tpu.core_type = #tpu.core_type<tc>, window_params = [{transform_indices = @transform_0, window_bounds = array<i64: 2, 16, 16>}, {pipeline_mode = #tpu.pipeline_mode<synchronous>, transform_indices = @transform_1, window_bounds = array<i64: 16, 256>}, {pipeline_mode = #tpu.pipeline_mode<synchronous>, transform_indices = @transform_2, window_bounds = array<i64: 16, 256>}, {pipeline_mode = #tpu.pipeline_mode<synchronous>, transform_indices = @transform_3, window_bounds = array<i64: 16, 256>}, {pipeline_mode = #tpu.pipeline_mode<synchronous>, transform_indices = @transform_4, window_bounds = array<i64: 16, 256>}, {transform_indices = @transform_5, window_bounds = array<i64: 2, 128, 256>}]} {
    %0 = tpu.iota {dimensions = array<i32: 0>} : vector<64x1xi32>
    %1 = arith.sitofp %0 : vector<64x1xi32> to vector<64x1xf32>
    %cst = arith.constant 5.000000e-01 : f32
    %2 = vector.broadcast %cst : f32 to vector<64x1xf32>
    %3 = arith.mulf %1, %2 : vector<64x1xf32>
    %4 = math.floor %3 : vector<64x1xf32>
    %cst_0 = arith.constant -0.287823141 : f32
    %5 = vector.broadcast %cst_0 : f32 to vector<64x1xf32>
    %6 = arith.mulf %4, %5 : vector<64x1xf32>
    %7 = math.exp %6 : vector<64x1xf32>
    %cst_1 = arith.constant 2.000000e+00 : f32
    %8 = vector.broadcast %cst_1 : f32 to vector<64x1xf32>
    %9 = arith.mulf %8, %4 : vector<64x1xf32>
    %10 = arith.subf %1, %9 : vector<64x1xf32>
    %cst_2 = arith.constant 1.57079637 : f32
    %11 = vector.broadcast %cst_2 : f32 to vector<64x1xf32>
    %12 = arith.mulf %10, %11 : vector<64x1xf32>
    %c0_i32 = arith.constant 0 : i32
    %c2_i32 = arith.constant 2 : i32
    %13 = arith.addi %c0_i32, %c2_i32 : i32
    %c1_i32 = arith.constant 1 : i32
    scf.for %arg7 = %c0_i32 to %13 step %c1_i32  : i32 {
      %14 = arith.index_cast %arg7 : i32 to index
      %c0 = arith.constant 0 : index
      %c0_4 = arith.constant 0 : index
      %15 = vector.load %arg1[%14, %c0, %c0_4] : memref<2x16x16xbf16, #tpu.memory_space<vmem>>, vector<1x16x16xbf16>
      %16 = vector.shape_cast %15 : vector<1x16x16xbf16> to vector<16x16xbf16>
      %c0_5 = arith.constant 0 : index
      %c0_6 = arith.constant 0 : index
      %17 = vector.load %arg2[%c0_5, %c0_6] : memref<16x256xbf16, #tpu.memory_space<vmem>>, vector<16x256xbf16>
      %cst_7 = arith.constant dense<0.000000e+00> : vector<16x256xf32>
      %18 = tpu.matmul %16, %17, %cst_7 {dimension_numbers = #tpu.dot_dimension_numbers<[1], [0], [0], [1], [0, 0, 1, 1], [], []>} : vector<16x16xbf16>, vector<16x256xbf16>, vector<16x256xf32> -> vector<16x256xf32>
      %c0_8 = arith.constant 0 : index
      %c0_9 = arith.constant 0 : index
      %19 = vector.load %arg4[%c0_8, %c0_9] : memref<16x256xf32, #tpu.memory_space<vmem>>, vector<16x256xf32>
      %20 = arith.mulf %18, %19 : vector<16x256xf32>
      %cst_10 = arith.constant dense<0.000000e+00> : vector<256xf32>
      %21 = vector.multi_reduction <add>, %20, %cst_10 [0] : vector<16x256xf32> to vector<256xf32>
      %22 = vector.shape_cast %21 : vector<256xf32> to vector<1x256xf32>
      %23 = vector.broadcast %22 : vector<1x256xf32> to vector<64x256xf32>
      %24 = vector.broadcast %7 : vector<64x1xf32> to vector<64x256xf32>
      %25 = arith.mulf %23, %24 : vector<64x256xf32>
      %26 = vector.broadcast %12 : vector<64x1xf32> to vector<64x256xf32>
      %27 = arith.addf %25, %26 : vector<64x256xf32>
      %cst_11 = arith.constant 0.318309873 : f32
      %28 = vector.broadcast %cst_11 : f32 to vector<64x256xf32>
      %29 = arith.mulf %27, %28 : vector<64x256xf32>
      %cst_12 = arith.constant 5.000000e-01 : f32
      %30 = vector.broadcast %cst_12 : f32 to vector<64x256xf32>
      %31 = arith.addf %29, %30 : vector<64x256xf32>
      %32 = math.floor %31 : vector<64x256xf32>
      %cst_13 = arith.constant 3.140625 : f32
      %33 = vector.broadcast %cst_13 : f32 to vector<64x256xf32>
      %34 = arith.mulf %32, %33 : vector<64x256xf32>
      %35 = arith.subf %27, %34 : vector<64x256xf32>
      %cst_14 = arith.constant 9.67653584E-4 : f32
      %36 = vector.broadcast %cst_14 : f32 to vector<64x256xf32>
      %37 = arith.mulf %32, %36 : vector<64x256xf32>
      %38 = arith.subf %35, %37 : vector<64x256xf32>
      %cst_15 = arith.constant 5.000000e-01 : f32
      %39 = vector.broadcast %cst_15 : f32 to vector<64x256xf32>
      %40 = arith.mulf %32, %39 : vector<64x256xf32>
      %41 = math.floor %40 : vector<64x256xf32>
      %cst_16 = arith.constant 2.000000e+00 : f32
      %42 = vector.broadcast %cst_16 : f32 to vector<64x256xf32>
      %43 = arith.mulf %42, %41 : vector<64x256xf32>
      %44 = arith.subf %32, %43 : vector<64x256xf32>
      %cst_17 = arith.constant 2.000000e+00 : f32
      %45 = vector.broadcast %cst_17 : f32 to vector<64x256xf32>
      %46 = arith.mulf %45, %44 : vector<64x256xf32>
      %cst_18 = arith.constant 1.000000e+00 : f32
      %47 = vector.broadcast %cst_18 : f32 to vector<64x256xf32>
      %48 = arith.subf %47, %46 : vector<64x256xf32>
      %49 = arith.mulf %38, %38 : vector<64x256xf32>
      %cst_19 = arith.constant 2.75573188E-6 : f32
      %50 = vector.broadcast %cst_19 : f32 to vector<64x256xf32>
      %51 = arith.mulf %50, %49 : vector<64x256xf32>
      %cst_20 = arith.constant 1.98412701E-4 : f32
      %52 = vector.broadcast %cst_20 : f32 to vector<64x256xf32>
      %53 = arith.subf %51, %52 : vector<64x256xf32>
      %54 = arith.mulf %53, %49 : vector<64x256xf32>
      %cst_21 = arith.constant 0.00833333284 : f32
      %55 = vector.broadcast %cst_21 : f32 to vector<64x256xf32>
      %56 = arith.addf %54, %55 : vector<64x256xf32>
      %57 = arith.mulf %56, %49 : vector<64x256xf32>
      %cst_22 = arith.constant 0.166666672 : f32
      %58 = vector.broadcast %cst_22 : f32 to vector<64x256xf32>
      %59 = arith.subf %57, %58 : vector<64x256xf32>
      %60 = arith.mulf %38, %49 : vector<64x256xf32>
      %61 = arith.mulf %60, %59 : vector<64x256xf32>
      %62 = arith.addf %38, %61 : vector<64x256xf32>
      %63 = arith.mulf %48, %62 : vector<64x256xf32>
      %64 = arith.index_cast %arg7 : i32 to index
      %c0_23 = arith.constant 0 : index
      %c0_24 = arith.constant 0 : index
      %65 = vector.load %arg6[%64, %c0_23, %c0_24] : memref<2x128x256xf32, #tpu.memory_space<vmem>>, vector<1x64x256xf32>
      %66 = vector.shape_cast %65 : vector<1x64x256xf32> to vector<64x256xf32>
      %67 = vector.shape_cast %63 : vector<64x256xf32> to vector<1x64x256xf32>
      tpu.vector_store %arg6[%64, %c0_23, %c0_24], %67 {strides = array<i32>} : memref<2x128x256xf32, #tpu.memory_space<vmem>>, vector<1x64x256xf32>,
      %68 = arith.index_cast %arg7 : i32 to index
      %c0_25 = arith.constant 0 : index
      %c0_26 = arith.constant 0 : index
      %69 = vector.load %arg1[%68, %c0_25, %c0_26] : memref<2x16x16xbf16, #tpu.memory_space<vmem>>, vector<1x16x16xbf16>
      %70 = vector.shape_cast %69 : vector<1x16x16xbf16> to vector<16x16xbf16>
      %c0_27 = arith.constant 0 : index
      %c0_28 = arith.constant 0 : index
      %71 = vector.load %arg3[%c0_27, %c0_28] : memref<16x256xbf16, #tpu.memory_space<vmem>>, vector<16x256xbf16>
      %cst_29 = arith.constant dense<0.000000e+00> : vector<16x256xf32>
      %72 = tpu.matmul %70, %71, %cst_29 {dimension_numbers = #tpu.dot_dimension_numbers<[1], [0], [0], [1], [0, 0, 1, 1], [], []>} : vector<16x16xbf16>, vector<16x256xbf16>, vector<16x256xf32> -> vector<16x256xf32>
      %c0_30 = arith.constant 0 : index
      %c0_31 = arith.constant 0 : index
      %73 = vector.load %arg5[%c0_30, %c0_31] : memref<16x256xf32, #tpu.memory_space<vmem>>, vector<16x256xf32>
      %74 = arith.mulf %72, %73 : vector<16x256xf32>
      %cst_32 = arith.constant dense<0.000000e+00> : vector<256xf32>
      %75 = vector.multi_reduction <add>, %74, %cst_32 [0] : vector<16x256xf32> to vector<256xf32>
      %76 = vector.shape_cast %75 : vector<256xf32> to vector<1x256xf32>
      %77 = vector.broadcast %76 : vector<1x256xf32> to vector<64x256xf32>
      %78 = vector.broadcast %7 : vector<64x1xf32> to vector<64x256xf32>
      %79 = arith.mulf %77, %78 : vector<64x256xf32>
      %80 = vector.broadcast %12 : vector<64x1xf32> to vector<64x256xf32>
      %81 = arith.addf %79, %80 : vector<64x256xf32>
      %cst_33 = arith.constant 0.318309873 : f32
      %82 = vector.broadcast %cst_33 : f32 to vector<64x256xf32>
      %83 = arith.mulf %81, %82 : vector<64x256xf32>
      %cst_34 = arith.constant 5.000000e-01 : f32
      %84 = vector.broadcast %cst_34 : f32 to vector<64x256xf32>
      %85 = arith.addf %83, %84 : vector<64x256xf32>
      %86 = math.floor %85 : vector<64x256xf32>
      %cst_35 = arith.constant 3.140625 : f32
      %87 = vector.broadcast %cst_35 : f32 to vector<64x256xf32>
      %88 = arith.mulf %86, %87 : vector<64x256xf32>
      %89 = arith.subf %81, %88 : vector<64x256xf32>
      %cst_36 = arith.constant 9.67653584E-4 : f32
      %90 = vector.broadcast %cst_36 : f32 to vector<64x256xf32>
      %91 = arith.mulf %86, %90 : vector<64x256xf32>
      %92 = arith.subf %89, %91 : vector<64x256xf32>
      %cst_37 = arith.constant 5.000000e-01 : f32
      %93 = vector.broadcast %cst_37 : f32 to vector<64x256xf32>
      %94 = arith.mulf %86, %93 : vector<64x256xf32>
      %95 = math.floor %94 : vector<64x256xf32>
      %cst_38 = arith.constant 2.000000e+00 : f32
      %96 = vector.broadcast %cst_38 : f32 to vector<64x256xf32>
      %97 = arith.mulf %96, %95 : vector<64x256xf32>
      %98 = arith.subf %86, %97 : vector<64x256xf32>
      %cst_39 = arith.constant 2.000000e+00 : f32
      %99 = vector.broadcast %cst_39 : f32 to vector<64x256xf32>
      %100 = arith.mulf %99, %98 : vector<64x256xf32>
      %cst_40 = arith.constant 1.000000e+00 : f32
      %101 = vector.broadcast %cst_40 : f32 to vector<64x256xf32>
      %102 = arith.subf %101, %100 : vector<64x256xf32>
      %103 = arith.mulf %92, %92 : vector<64x256xf32>
      %cst_41 = arith.constant 2.75573188E-6 : f32
      %104 = vector.broadcast %cst_41 : f32 to vector<64x256xf32>
      %105 = arith.mulf %104, %103 : vector<64x256xf32>
      %cst_42 = arith.constant 1.98412701E-4 : f32
      %106 = vector.broadcast %cst_42 : f32 to vector<64x256xf32>
      %107 = arith.subf %105, %106 : vector<64x256xf32>
      %108 = arith.mulf %107, %103 : vector<64x256xf32>
      %cst_43 = arith.constant 0.00833333284 : f32
      %109 = vector.broadcast %cst_43 : f32 to vector<64x256xf32>
      %110 = arith.addf %108, %109 : vector<64x256xf32>
      %111 = arith.mulf %110, %103 : vector<64x256xf32>
      %cst_44 = arith.constant 0.166666672 : f32
      %112 = vector.broadcast %cst_44 : f32 to vector<64x256xf32>
      %113 = arith.subf %111, %112 : vector<64x256xf32>
      %114 = arith.mulf %92, %103 : vector<64x256xf32>
      %115 = arith.mulf %114, %113 : vector<64x256xf32>
      %116 = arith.addf %92, %115 : vector<64x256xf32>
      %117 = arith.mulf %102, %116 : vector<64x256xf32>
      %118 = arith.index_cast %arg7 : i32 to index
      %c64 = arith.constant 64 : index
      %c0_45 = arith.constant 0 : index
      %119 = vector.load %arg6[%118, %c64, %c0_45] : memref<2x128x256xf32, #tpu.memory_space<vmem>>, vector<1x64x256xf32>
      %120 = vector.shape_cast %119 : vector<1x64x256xf32> to vector<64x256xf32>
      %121 = vector.shape_cast %117 : vector<64x256xf32> to vector<1x64x256xf32>
      tpu.vector_store %arg6[%118, %c64, %c0_45], %121 {strides = array<i32>} : memref<2x128x256xf32, #tpu.memory_space<vmem>>, vector<1x64x256xf32>,
    }
    %c2_i32_3 = arith.constant 2 : i32
    return
  }
  func.func @transform_0(%arg0: i32) -> (i32, i32, i32) {
    %c0_i32 = arith.constant 0 : i32
    %c0_i32_0 = arith.constant 0 : i32
    %c0_i32_1 = arith.constant 0 : i32
    return %arg0, %c0_i32, %c0_i32_0 : i32, i32, i32
  }
  func.func @transform_1(%arg0: i32) -> (i32, i32) {
    %c0_i32 = arith.constant 0 : i32
    %c0_i32_0 = arith.constant 0 : i32
    %c0_i32_1 = arith.constant 0 : i32
    return %c0_i32, %c0_i32_0 : i32, i32
  }
  func.func @transform_2(%arg0: i32) -> (i32, i32) {
    %c0_i32 = arith.constant 0 : i32
    %c0_i32_0 = arith.constant 0 : i32
    %c0_i32_1 = arith.constant 0 : i32
    return %c0_i32, %c0_i32_0 : i32, i32
  }
  func.func @transform_3(%arg0: i32) -> (i32, i32) {
    %c0_i32 = arith.constant 0 : i32
    %c0_i32_0 = arith.constant 0 : i32
    %c0_i32_1 = arith.constant 0 : i32
    return %c0_i32, %c0_i32_0 : i32, i32
  }
  func.func @transform_4(%arg0: i32) -> (i32, i32) {
    %c0_i32 = arith.constant 0 : i32
    %c0_i32_0 = arith.constant 0 : i32
    %c0_i32_1 = arith.constant 0 : i32
    return %c0_i32, %c0_i32_0 : i32, i32
  }
  func.func @transform_5(%arg0: i32) -> (i32, i32, i32) {
    %c0_i32 = arith.constant 0 : i32
    %c0_i32_0 = arith.constant 0 : i32
    %c0_i32_1 = arith.constant 0 : i32
    return %arg0, %c0_i32, %c0_i32_0 : i32, i32, i32
  }
}

</mosaic_0001>

<llo_original>
// kernel: tpu_custom_call.1
$region0: #{tpu_custom_call.1}
  #allocation0 [shape = 'u32[]', space=smem, size = 0x4, offset = 0x4, fixed_abs, tag = 'smem constant byte address 0x4 - core index']
  #allocation1 [shape = 'u32[144,128]{1,0:T(1,128)}', space=vmem, size = 0x12000, scoped, tag = 'internal scratch']
  %s0 = inlined_call_operand.hbm [shape: bf16[2,16,16], index: 0, kind: input, shape index: {}]
  %s1 = inlined_call_operand.hbm [shape: bf16[16,256], index: 1, kind: input, shape index: {}]
  %s2 = inlined_call_operand.hbm [shape: bf16[16,256], index: 2, kind: input, shape index: {}]
  %s3 = inlined_call_operand.hbm [shape: f32[16,256], index: 3, kind: input, shape index: {}]
  %s4 = inlined_call_operand.hbm [shape: f32[16,256], index: 4, kind: input, shape index: {}]
  %s5 = inlined_call_operand.hbm [shape: f32[2,128,256], index: 5, kind: output, shape index: {}]
  %s6 = sld [smem:[#allocation0]]
  $region57: #{tpu_custom_call.1} parent=0
    _
  %s8 = ssub.s32 1, %s6
  %s9 = scalar_select 0, %s8, %s6
  $region1: #{tpu_custom_call.1} parent=0
    #allocation2 [shape = 'u8[8192]{0}', space=vmem, size = 0x2000, scoped, tag = 'input window, operand 0, single buffered']
    #allocation3 [shape = 's32[1]{0}', space=sflag, size = 0x4, scoped, tag = 'scoped memory for tpu_custom_call.1']
    #allocation4 [shape = 's32[1]{0}', space=sflag, size = 0x4, scoped, tag = 'scoped memory for tpu_custom_call.1']
    #allocation5 [shape = 'u8[8192]{0}', space=vmem, size = 0x2000, scoped, tag = 'input window, operand 1, single buffered']
    #allocation6 [shape = 's32[1]{0}', space=sflag, size = 0x4, scoped, tag = 'scoped memory for tpu_custom_call.1']
    #allocation7 [shape = 'u8[8192]{0}', space=vmem, size = 0x2000, scoped, tag = 'input window, operand 2, single buffered']
    #allocation8 [shape = 'u8[16384]{0}', space=vmem, size = 0x4000, scoped, tag = 'input window, operand 3, single buffered']
    #allocation9 [shape = 's32[1]{0}', space=sflag, size = 0x4, scoped, tag = 'scoped memory for tpu_custom_call.1']
    #allocation10 [shape = 'u8[16384]{0}', space=vmem, size = 0x4000, scoped, tag = 'input window, operand 4, single buffered']
    #allocation11 [shape = 'u8[262144]{0}', space=vmem, size = 0x40000, scoped, tag = 'output window, operand 0, single buffered']
    %10 = vsyncpa [#allocation3], 0
    %11 = vsyncpa [#allocation6], 0
    %12 = vsyncpa [#allocation9], 0
    %13 = vsyncpa [#allocation4], 0
    // Predicated region
    $region2: #{tpu_custom_call.1} parent=1 // pred_check
      _
    $region3: #{tpu_custom_call.1} parent=1 // pred_check_branch
      %15 = sbr.rel (0) target = $region5
    $region4: #{tpu_custom_call.1} parent=1 // pred_region
      %s17 = ssub.s32 256, 256
      %18 = vsyncadd [#allocation3], %s17
      %s19 = sshll.u32 [#allocation2], 4
      %s20 = int_to_ptr.vmem [resolvable:$true] %s19
      %25 = dma.hbm_to_vmem [thread:$0]  %s0, 256, %s20, [#allocation3], 64, 64, 4
    $region5: #{tpu_custom_call.1} parent=1 // pred_fallthru
      _
    // Predicated region
    $region6: #{tpu_custom_call.1} parent=1 // pred_check
      _
    $region7: #{tpu_custom_call.1} parent=1 // pred_check_branch
      %27 = sbr.rel (0) target = $region9
    $region8: #{tpu_custom_call.1} parent=1 // pred_region
      %s29 = ssub.s32 256, 256
      %30 = vsyncadd [#allocation6], %s29
      %s31 = sshll.u32 [#allocation5], 4
      %s32 = int_to_ptr.vmem [resolvable:$true] %s31
      %37 = dma.hbm_to_vmem [thread:$0]  %s1, 256, %s32, [#allocation6], 128, 128, 8
    $region9: #{tpu_custom_call.1} parent=1 // pred_fallthru
      _
    // Predicated region
    $region10: #{tpu_custom_call.1} parent=1 // pred_check
      _
    $region11: #{tpu_custom_call.1} parent=1 // pred_check_branch
      %39 = sbr.rel (0) target = $region13
    $region12: #{tpu_custom_call.1} parent=1 // pred_region
      %s41 = ssub.s32 256, 256
      %42 = vsyncadd [#allocation6], %s41
      %s43 = sshll.u32 [#allocation7], 4
      %s44 = int_to_ptr.vmem [resolvable:$true] %s43
      %49 = dma.hbm_to_vmem [thread:$0]  %s2, 256, %s44, [#allocation6], 128, 128, 8
    $region13: #{tpu_custom_call.1} parent=1 // pred_fallthru
      _
    // Predicated region
    $region14: #{tpu_custom_call.1} parent=1 // pred_check
      _
    $region15: #{tpu_custom_call.1} parent=1 // pred_check_branch
      %51 = sbr.rel (0) target = $region17
    $region16: #{tpu_custom_call.1} parent=1 // pred_region
      %s53 = ssub.s32 512, 512
      %54 = vsyncadd [#allocation9], %s53
      %s55 = sshll.u32 [#allocation8], 4
      %s56 = int_to_ptr.vmem [resolvable:$true] %s55
      %61 = dma.hbm_to_vmem [thread:$0]  %s3, 512, %s56, [#allocation9], 256, 256, 16
    $region17: #{tpu_custom_call.1} parent=1 // pred_fallthru
      _
    // Predicated region
    $region18: #{tpu_custom_call.1} parent=1 // pred_check
      _
    $region19: #{tpu_custom_call.1} parent=1 // pred_check_branch
      %63 = sbr.rel (0) target = $region21
    $region20: #{tpu_custom_call.1} parent=1 // pred_region
      %s65 = ssub.s32 512, 512
      %66 = vsyncadd [#allocation9], %s65
      %s67 = sshll.u32 [#allocation10], 4
      %s68 = int_to_ptr.vmem [resolvable:$true] %s67
      %73 = dma.hbm_to_vmem [thread:$0]  %s4, 512, %s68, [#allocation9], 256, 256, 16
    $region21: #{tpu_custom_call.1} parent=1 // pred_fallthru
      _
    // Predicated region
    $region22: #{tpu_custom_call.1} parent=1 // pred_check
      _
    $region23: #{tpu_custom_call.1} parent=1 // pred_check_branch
      %75 = sbr.rel (0) target = $region25
    $region24: #{tpu_custom_call.1} parent=1 // pred_region
      %76 = dma.done [#allocation3], 256
    $region25: #{tpu_custom_call.1} parent=1 // pred_fallthru
      _
    // Predicated region
    $region26: #{tpu_custom_call.1} parent=1 // pred_check
      _
    $region27: #{tpu_custom_call.1} parent=1 // pred_check_branch
      %78 = sbr.rel (0) target = $region29
    $region28: #{tpu_custom_call.1} parent=1 // pred_region
      %79 = dma.done [#allocation6], 256
    $region29: #{tpu_custom_call.1} parent=1 // pred_fallthru
      _
    // Predicated region
    $region30: #{tpu_custom_call.1} parent=1 // pred_check
      _
    $region31: #{tpu_custom_call.1} parent=1 // pred_check_branch
      %81 = sbr.rel (0) target = $region33
    $region32: #{tpu_custom_call.1} parent=1 // pred_region
      %82 = dma.done [#allocation6], 256
    $region33: #{tpu_custom_call.1} parent=1 // pred_fallthru
      _
    // Predicated region
    $region34: #{tpu_custom_call.1} parent=1 // pred_check
      _
    $region35: #{tpu_custom_call.1} parent=1 // pred_check_branch
      %84 = sbr.rel (0) target = $region37
    $region36: #{tpu_custom_call.1} parent=1 // pred_region
      %85 = dma.done [#allocation9], 512
    $region37: #{tpu_custom_call.1} parent=1 // pred_fallthru
      _
    // Predicated region
    $region38: #{tpu_custom_call.1} parent=1 // pred_check
      _
    $region39: #{tpu_custom_call.1} parent=1 // pred_check_branch
      %87 = sbr.rel (0) target = $region41
    $region40: #{tpu_custom_call.1} parent=1 // pred_region
      %88 = dma.done [#allocation9], 512
    $region41: #{tpu_custom_call.1} parent=1 // pred_fallthru
      _
    %v90 = vlaneseq
    %v91 = vshrl.u32 %v90, 7
    %v92 = vadd.s32 %v91, 8
    %v93 = vadd.s32 %v91, 16
    %v94 = vadd.s32 %v91, 24
    %v95 = vadd.s32 %v91, 32
    %v96 = vadd.s32 %v91, 40
    %v97 = vadd.s32 %v91, 48
    %v98 = vadd.s32 %v91, 56
    %v99 = vcvt.s32.f32 %v91
    %v100 = vcvt.s32.f32 %v92
    %v101 = vcvt.s32.f32 %v93
    %v102 = vcvt.s32.f32 %v94
    %v103 = vcvt.s32.f32 %v95
    %v104 = vcvt.s32.f32 %v96
    %v105 = vcvt.s32.f32 %v97
    %v106 = vcvt.s32.f32 %v98
    %v107 = vmul.f32 %v99, 0.5
    %v108 = vmul.f32 %v100, 0.5
    %v109 = vmul.f32 %v101, 0.5
    %v110 = vmul.f32 %v102, 0.5
    %v111 = vmul.f32 %v103, 0.5
    %v112 = vmul.f32 %v104, 0.5
    %v113 = vmul.f32 %v105, 0.5
    %v114 = vmul.f32 %v106, 0.5
    %v115 = vfloor.f32 %v107
    %v116 = vfloor.f32 %v108
    %v117 = vfloor.f32 %v109
    %v118 = vfloor.f32 %v110
    %v119 = vfloor.f32 %v111
    %v120 = vfloor.f32 %v112
    %v121 = vfloor.f32 %v113
    %v122 = vfloor.f32 %v114
    %v123 = vmul.f32 %v115, -0.28782314
    %v124 = vmul.f32 %v116, -0.28782314
    %v125 = vmul.f32 %v117, -0.28782314
    %v126 = vmul.f32 %v118, -0.28782314
    %v127 = vmul.f32 %v119, -0.28782314
    %v128 = vmul.f32 %v120, -0.28782314
    %v129 = vmul.f32 %v121, -0.28782314
    %v130 = vmul.f32 %v122, -0.28782314
    %v131 = vmul.f32 %v123, 1.442695
    %v132 = vpow.pop %v131
    %v133 = vmul.f32 %v124, 1.442695
    %v134 = vpow.pop %v133
    %v135 = vmul.f32 %v125, 1.442695
    %v136 = vpow.pop %v135
    %v137 = vmul.f32 %v126, 1.442695
    %v138 = vpow.pop %v137
    %v139 = vmul.f32 %v127, 1.442695
    %v140 = vpow.pop %v139
    %v141 = vmul.f32 %v128, 1.442695
    %v142 = vpow.pop %v141
    %v143 = vmul.f32 %v129, 1.442695
    %v144 = vpow.pop %v143
    %v145 = vmul.f32 %v130, 1.442695
    %v146 = vpow.pop %v145
    %v147 = vmul.f32 %v115, 2.0
    %v148 = vmul.f32 %v116, 2.0
    %v149 = vmul.f32 %v117, 2.0
    %v150 = vmul.f32 %v118, 2.0
    %v151 = vmul.f32 %v119, 2.0
    %v152 = vmul.f32 %v120, 2.0
    %v153 = vmul.f32 %v121, 2.0
    %v154 = vmul.f32 %v122, 2.0
    %v155 = vsub.f32 %v99, %v147
    %v156 = vsub.f32 %v100, %v148
    %v157 = vsub.f32 %v101, %v149
    %v158 = vsub.f32 %v102, %v150
    %v159 = vsub.f32 %v103, %v151
    %v160 = vsub.f32 %v104, %v152
    %v161 = vsub.f32 %v105, %v153
    %v162 = vsub.f32 %v106, %v154
    %v163 = vmul.f32 %v155, 1.5707964
    %v164 = vmul.f32 %v156, 1.5707964
    %v165 = vmul.f32 %v157, 1.5707964
    %v166 = vmul.f32 %v158, 1.5707964
    %v167 = vmul.f32 %v159, 1.5707964
    %v168 = vmul.f32 %v160, 1.5707964
    %v169 = vmul.f32 %v161, 1.5707964
    %v170 = vmul.f32 %v162, 1.5707964
    loop: start=0, step=1, limit=2
    $region42: #{tpu_custom_call.1} parent=1 // loop_pre_header
      _
    $region43: #{tpu_custom_call.1} parent=1 // loop_header
      %s172 = sphi 0, %s176
      %p173 = scmp.ge.s32.totalorder %s172, 2
    $region44: #{tpu_custom_call.1} parent=1 // loop_header_branch
      %175 = sbr.rel (%p173) target = $region48
    $region45: #{tpu_custom_call.1} parent=1 // loop_body
      %s177 = smul.u32 %s172, 2
      %s178 = smul.addr %s177, 4
      %s179 = scalar_lea.vmem [#allocation2], %s178
      %v180 = vld [vmem:[%s179] sm:$0xf]
      %v181 = vld [vmem:[%s179 + $0x4] sm:$0xf]
      %v182 = vld [vmem:[#allocation5] sm:$0xff]
      %v183 = vld [vmem:[#allocation5 + $0x8] sm:$0xff]
      %v186 = vunpack.c.l.b16 %v180
      %v187 = vunpack.c.l.b16 %v181
      %v188 = vpack.c.b16 %v187, %v186
      %v191 = vunpack.c.l.b16 %v182
      %v192 = vunpack.c.h.b16 %v182
      %v193 = vunpack.c.l.b16 %v183
      %v194 = vunpack.c.h.b16 %v183
      %v195 = vpack.c.b16 %v193, %v191
      %v196 = vpack.c.b16 %v194, %v192
      %vm199 = vcmask 130048
      %v201 = vsel %vm199, %v188, 0
      %203 = vmatprep.subr.bf16.mxu0 %v196
      %204 = vmatpush1.bf16.msra.mxu0 %v195
      %205 = vmatprep.subr.bf16.mxu0 0
      %206 = vmatpush1.bf16.msra.mxu0 0
      %207 = vmatprep.subr.bf16.mxu0 0
      %208 = vmatpush1.bf16.msra.mxu0 0
      %209 = vmatprep.subr.bf16.mxu0 0
      %210 = vmatpush1.bf16.msra.mxu0 0
      %211 = vmatprep.subr.bf16.mxu0 0
      %212 = vmatpush1.bf16.msra.mxu0 0
      %213 = vmatprep.subr.bf16.mxu0 0
      %214 = vmatpush1.bf16.msra.mxu0 0
      %215 = vmatprep.subr.bf16.mxu0 0
      %216 = vmatpush1.bf16.msra.mxu0 0
      %217 = vmatprep.subr.bf16.mxu0 0
      %218 = vmatpush1.bf16.msra.mxu0 0
      %219 = vmatprep.subr.bf16.mxu0 0
      %220 = vmatpush1.bf16.msra.mxu0 0
      %221 = vmatprep.subr.bf16.mxu0 0
      %222 = vmatpush1.bf16.msra.mxu0 0
      %223 = vmatprep.subr.bf16.mxu0 0
      %224 = vmatpush1.bf16.msra.mxu0 0
      %225 = vmatprep.subr.bf16.mxu0 0
      %226 = vmatpush1.bf16.msra.mxu0 0
      %227 = vmatprep.subr.bf16.mxu0 0
      %228 = vmatpush1.bf16.msra.mxu0 0
      %229 = vmatprep.subr.bf16.mxu0 0
      %230 = vmatpush1.bf16.msra.mxu0 0
      %231 = vmatprep.subr.bf16.mxu0 0
      %232 = vmatpush1.bf16.msra.mxu0 0
      %233 = vmatprep.subr.bf16.mxu0 0
      %234 = vmatpush1.bf16.msra.mxu0 0
      %235 = vmatprep.mubr.bf16.mxu0 0
      %236 = vmatmul.mubr.bf16.gmra.mrb[0].mxu0 %v201
      %v237 = vpop.f32.mrb[0].mxu0
      %v238 = vadd.f32 0.0, %v237
      %v239 = vpop.f32.mrb[0].mxu0
      %v240 = vadd.f32 0.0, %v239
      %v241 = vpop.f32.mrb[0].mxu0
      %v242 = vadd.f32 0.0, %v241
      %v243 = vpop.f32.mrb[0].mxu0
      %v244 = vadd.f32 0.0, %v243
      %245 = vdwg.mxu0
      %v246 = vld [vmem:[#allocation8] sm:$0xff]
      %v247 = vld [vmem:[#allocation8 + $0x8] sm:$0xff]
      %v248 = vld [vmem:[#allocation8 + $0x10] sm:$0xff]
      %v249 = vld [vmem:[#allocation8 + $0x18] sm:$0xff]
      %v250 = vmul.f32 %v238, %v246
      %v251 = vmul.f32 %v240, %v247
      %v252 = vmul.f32 %v242, %v248
      %v253 = vmul.f32 %v244, %v249
      %v254 = vadd.f32 %v250, %v252
      %v255 = vrot.slane %v254, 4
      %v256 = vadd.f32 %v254, %v255
      %v257 = vrot.slane %v256, 2
      %v258 = vadd.f32 %v256, %v257
      %v259 = vrot.slane %v258, 1
      %v260 = vadd.f32 %v258, %v259
      %v261 = vadd.f32 %v251, %v253
      %v262 = vrot.slane %v261, 4
      %v263 = vadd.f32 %v261, %v262
      %v264 = vrot.slane %v263, 2
      %v265 = vadd.f32 %v263, %v264
      %v266 = vrot.slane %v265, 1
      %v267 = vadd.f32 %v265, %v266
      %v268 = vmul.f32 %v260, %v132
      %v269 = vmul.f32 %v267, %v132
      %v270 = vmul.f32 %v260, %v134
      %v271 = vmul.f32 %v267, %v134
      %v272 = vmul.f32 %v260, %v136
      %v273 = vmul.f32 %v267, %v136
      %v274 = vmul.f32 %v260, %v138
      %v275 = vmul.f32 %v267, %v138
      %v276 = vmul.f32 %v260, %v140
      %v277 = vmul.f32 %v267, %v140
      %v278 = vmul.f32 %v260, %v142
      %v279 = vmul.f32 %v267, %v142
      %v280 = vmul.f32 %v260, %v144
      %v281 = vmul.f32 %v267, %v144
      %v282 = vmul.f32 %v260, %v146
      %v283 = vmul.f32 %v267, %v146
      %v284 = vadd.f32 %v268, %v163
      %v285 = vadd.f32 %v269, %v163
      %v286 = vadd.f32 %v270, %v164
      %v287 = vadd.f32 %v271, %v164
      %v288 = vadd.f32 %v272, %v165
      %v289 = vadd.f32 %v273, %v165
      %v290 = vadd.f32 %v274, %v166
      %v291 = vadd.f32 %v275, %v166
      %v292 = vadd.f32 %v276, %v167
      %v293 = vadd.f32 %v277, %v167
      %v294 = vadd.f32 %v278, %v168
      %v295 = vadd.f32 %v279, %v168
      %v296 = vadd.f32 %v280, %v169
      %v297 = vadd.f32 %v281, %v169
      %v298 = vadd.f32 %v282, %v170
      %v299 = vadd.f32 %v283, %v170
      %v300 = vmul.f32 %v284, 0.31830987
      %v301 = vmul.f32 %v285, 0.31830987
      %v302 = vmul.f32 %v286, 0.31830987
      %v303 = vmul.f32 %v287, 0.31830987
      %v304 = vmul.f32 %v288, 0.31830987
      %v305 = vmul.f32 %v289, 0.31830987
      %v306 = vmul.f32 %v290, 0.31830987
      %v307 = vmul.f32 %v291, 0.31830987
      %v308 = vmul.f32 %v292, 0.31830987
      %v309 = vmul.f32 %v293, 0.31830987
      %v310 = vmul.f32 %v294, 0.31830987
      %v311 = vmul.f32 %v295, 0.31830987
      %v312 = vmul.f32 %v296, 0.31830987
      %v313 = vmul.f32 %v297, 0.31830987
      %v314 = vmul.f32 %v298, 0.31830987
      %v315 = vmul.f32 %v299, 0.31830987
      %v316 = vadd.f32 %v300, 0.5
      %v317 = vadd.f32 %v301, 0.5
      %v318 = vadd.f32 %v302, 0.5
      %v319 = vadd.f32 %v303, 0.5
      %v320 = vadd.f32 %v304, 0.5
      %v321 = vadd.f32 %v305, 0.5
      %v322 = vadd.f32 %v306, 0.5
      %v323 = vadd.f32 %v307, 0.5
      %v324 = vadd.f32 %v308, 0.5
      %v325 = vadd.f32 %v309, 0.5
      %v326 = vadd.f32 %v310, 0.5
      %v327 = vadd.f32 %v311, 0.5
      %v328 = vadd.f32 %v312, 0.5
      %v329 = vadd.f32 %v313, 0.5
      %v330 = vadd.f32 %v314, 0.5
      %v331 = vadd.f32 %v315, 0.5
      %v332 = vfloor.f32 %v316
      %v333 = vfloor.f32 %v317
      %v334 = vfloor.f32 %v318
      %v335 = vfloor.f32 %v319
      %v336 = vfloor.f32 %v320
      %v337 = vfloor.f32 %v321
      %v338 = vfloor.f32 %v322
      %v339 = vfloor.f32 %v323
      %v340 = vfloor.f32 %v324
      %v341 = vfloor.f32 %v325
      %v342 = vfloor.f32 %v326
      %v343 = vfloor.f32 %v327
      %v344 = vfloor.f32 %v328
      %v345 = vfloor.f32 %v329
      %v346 = vfloor.f32 %v330
      %v347 = vfloor.f32 %v331
      %v348 = vmul.f32 %v332, 3.140625
      %v349 = vmul.f32 %v333, 3.140625
      %v350 = vmul.f32 %v334, 3.140625
      %v351 = vmul.f32 %v335, 3.140625
      %v352 = vmul.f32 %v336, 3.140625
      %v353 = vmul.f32 %v337, 3.140625
      %v354 = vmul.f32 %v338, 3.140625
      %v355 = vmul.f32 %v339, 3.140625
      %v356 = vmul.f32 %v340, 3.140625
      %v357 = vmul.f32 %v341, 3.140625
      %v358 = vmul.f32 %v342, 3.140625
      %v359 = vmul.f32 %v343, 3.140625
      %v360 = vmul.f32 %v344, 3.140625
      %v361 = vmul.f32 %v345, 3.140625
      %v362 = vmul.f32 %v346, 3.140625
      %v363 = vmul.f32 %v347, 3.140625
      %v364 = vsub.f32 %v284, %v348
      %v365 = vsub.f32 %v285, %v349
      %v366 = vsub.f32 %v286, %v350
      %v367 = vsub.f32 %v287, %v351
      %v368 = vsub.f32 %v288, %v352
      %v369 = vsub.f32 %v289, %v353
      %v370 = vsub.f32 %v290, %v354
      %v371 = vsub.f32 %v291, %v355
      %v372 = vsub.f32 %v292, %v356
      %v373 = vsub.f32 %v293, %v357
      %v374 = vsub.f32 %v294, %v358
      %v375 = vsub.f32 %v295, %v359
      %v376 = vsub.f32 %v296, %v360
      %v377 = vsub.f32 %v297, %v361
      %v378 = vsub.f32 %v298, %v362
      %v379 = vsub.f32 %v299, %v363
      %v380 = vmul.f32 %v332, 0.0009676536
      %v381 = vmul.f32 %v333, 0.0009676536
      %v382 = vmul.f32 %v334, 0.0009676536
      %v383 = vmul.f32 %v335, 0.0009676536
      %v384 = vmul.f32 %v336, 0.0009676536
      %v385 = vmul.f32 %v337, 0.0009676536
      %v386 = vmul.f32 %v338, 0.0009676536
      %v387 = vmul.f32 %v339, 0.0009676536
      %v388 = vmul.f32 %v340, 0.0009676536
      %v389 = vmul.f32 %v341, 0.0009676536
      %v390 = vmul.f32 %v342, 0.0009676536
      %v391 = vmul.f32 %v343, 0.0009676536
      %v392 = vmul.f32 %v344, 0.0009676536
      %v393 = vmul.f32 %v345, 0.0009676536
      %v394 = vmul.f32 %v346, 0.0009676536
      %v395 = vmul.f32 %v347, 0.0009676536
      %v396 = vsub.f32 %v364, %v380
      %v397 = vsub.f32 %v365, %v381
      %v398 = vsub.f32 %v366, %v382
      %v399 = vsub.f32 %v367, %v383
      %v400 = vsub.f32 %v368, %v384
      %v401 = vsub.f32 %v369, %v385
      %v402 = vsub.f32 %v370, %v386
      %v403 = vsub.f32 %v371, %v387
      %v404 = vsub.f32 %v372, %v388
      %v405 = vsub.f32 %v373, %v389
      %v406 = vsub.f32 %v374, %v390
      %v407 = vsub.f32 %v375, %v391
      %v408 = vsub.f32 %v376, %v392
      %v409 = vsub.f32 %v377, %v393
      %v410 = vsub.f32 %v378, %v394
      %v411 = vsub.f32 %v379, %v395
      %v412 = vmul.f32 %v332, 0.5
      %v413 = vmul.f32 %v333, 0.5
      %v414 = vmul.f32 %v334, 0.5
      %v415 = vmul.f32 %v335, 0.5
      %v416 = vmul.f32 %v336, 0.5
      %v417 = vmul.f32 %v337, 0.5
      %v418 = vmul.f32 %v338, 0.5
      %v419 = vmul.f32 %v339, 0.5
      %v420 = vmul.f32 %v340, 0.5
      %v421 = vmul.f32 %v341, 0.5
      %v422 = vmul.f32 %v342, 0.5
      %v423 = vmul.f32 %v343, 0.5
      %v424 = vmul.f32 %v344, 0.5
      %v425 = vmul.f32 %v345, 0.5
      %v426 = vmul.f32 %v346, 0.5
      %v427 = vmul.f32 %v347, 0.5
      %v428 = vfloor.f32 %v412
      %v429 = vfloor.f32 %v413
      %v430 = vfloor.f32 %v414
      %v431 = vfloor.f32 %v415
      %v432 = vfloor.f32 %v416
      %v433 = vfloor.f32 %v417
      %v434 = vfloor.f32 %v418
      %v435 = vfloor.f32 %v419
      %v436 = vfloor.f32 %v420
      %v437 = vfloor.f32 %v421
      %v438 = vfloor.f32 %v422
      %v439 = vfloor.f32 %v423
      %v440 = vfloor.f32 %v424
      %v441 = vfloor.f32 %v425
      %v442 = vfloor.f32 %v426
      %v443 = vfloor.f32 %v427
      %v444 = vmul.f32 %v428, 2.0
      %v445 = vmul.f32 %v429, 2.0
      %v446 = vmul.f32 %v430, 2.0
      %v447 = vmul.f32 %v431, 2.0
      %v448 = vmul.f32 %v432, 2.0
      %v449 = vmul.f32 %v433, 2.0
      %v450 = vmul.f32 %v434, 2.0
      %v451 = vmul.f32 %v435, 2.0
      %v452 = vmul.f32 %v436, 2.0
      %v453 = vmul.f32 %v437, 2.0
      %v454 = vmul.f32 %v438, 2.0
      %v455 = vmul.f32 %v439, 2.0
      %v456 = vmul.f32 %v440, 2.0
      %v457 = vmul.f32 %v441, 2.0
      %v458 = vmul.f32 %v442, 2.0
      %v459 = vmul.f32 %v443, 2.0
      %v460 = vsub.f32 %v332, %v444
      %v461 = vsub.f32 %v333, %v445
      %v462 = vsub.f32 %v334, %v446
      %v463 = vsub.f32 %v335, %v447
      %v464 = vsub.f32 %v336, %v448
      %v465 = vsub.f32 %v337, %v449
      %v466 = vsub.f32 %v338, %v450
      %v467 = vsub.f32 %v339, %v451
      %v468 = vsub.f32 %v340, %v452
      %v469 = vsub.f32 %v341, %v453
      %v470 = vsub.f32 %v342, %v454
      %v471 = vsub.f32 %v343, %v455
      %v472 = vsub.f32 %v344, %v456
      %v473 = vsub.f32 %v345, %v457
      %v474 = vsub.f32 %v346, %v458
      %v475 = vsub.f32 %v347, %v459
      %v476 = vmul.f32 %v460, 2.0
      %v477 = vmul.f32 %v461, 2.0
      %v478 = vmul.f32 %v462, 2.0
      %v479 = vmul.f32 %v463, 2.0
      %v480 = vmul.f32 %v464, 2.0
      %v481 = vmul.f32 %v465, 2.0
      %v482 = vmul.f32 %v466, 2.0
      %v483 = vmul.f32 %v467, 2.0
      %v484 = vmul.f32 %v468, 2.0
      %v485 = vmul.f32 %v469, 2.0
      %v486 = vmul.f32 %v470, 2.0
      %v487 = vmul.f32 %v471, 2.0
      %v488 = vmul.f32 %v472, 2.0
      %v489 = vmul.f32 %v473, 2.0
      %v490 = vmul.f32 %v474, 2.0
      %v491 = vmul.f32 %v475, 2.0
      %v492 = vsub.f32 1.0, %v476
      %v493 = vsub.f32 1.0, %v477
      %v494 = vsub.f32 1.0, %v478
      %v495 = vsub.f32 1.0, %v479
      %v496 = vsub.f32 1.0, %v480
      %v497 = vsub.f32 1.0, %v481
      %v498 = vsub.f32 1.0, %v482
      %v499 = vsub.f32 1.0, %v483
      %v500 = vsub.f32 1.0, %v484
      %v501 = vsub.f32 1.0, %v485
      %v502 = vsub.f32 1.0, %v486
      %v503 = vsub.f32 1.0, %v487
      %v504 = vsub.f32 1.0, %v488
      %v505 = vsub.f32 1.0, %v489
      %v506 = vsub.f32 1.0, %v490
      %v507 = vsub.f32 1.0, %v491
      %v508 = vmul.f32 %v396, %v396
      %v509 = vmul.f32 %v397, %v397
      %v510 = vmul.f32 %v398, %v398
      %v511 = vmul.f32 %v399, %v399
      %v512 = vmul.f32 %v400, %v400
      %v513 = vmul.f32 %v401, %v401
      %v514 = vmul.f32 %v402, %v402
      %v515 = vmul.f32 %v403, %v403
      %v516 = vmul.f32 %v404, %v404
      %v517 = vmul.f32 %v405, %v405
      %v518 = vmul.f32 %v406, %v406
      %v519 = vmul.f32 %v407, %v407
      %v520 = vmul.f32 %v408, %v408
      %v521 = vmul.f32 %v409, %v409
      %v522 = vmul.f32 %v410, %v410
      %v523 = vmul.f32 %v411, %v411
      %v524 = vmul.f32 %v508, 2.7557319e-06
      %v525 = vmul.f32 %v509, 2.7557319e-06
      %v526 = vmul.f32 %v510, 2.7557319e-06
      %v527 = vmul.f32 %v511, 2.7557319e-06
      %v528 = vmul.f32 %v512, 2.7557319e-06
      %v529 = vmul.f32 %v513, 2.7557319e-06
      %v530 = vmul.f32 %v514, 2.7557319e-06
      %v531 = vmul.f32 %v515, 2.7557319e-06
      %v532 = vmul.f32 %v516, 2.7557319e-06
      %v533 = vmul.f32 %v517, 2.7557319e-06
      %v534 = vmul.f32 %v518, 2.7557319e-06
      %v535 = vmul.f32 %v519, 2.7557319e-06
      %v536 = vmul.f32 %v520, 2.7557319e-06
      %v537 = vmul.f32 %v521, 2.7557319e-06
      %v538 = vmul.f32 %v522, 2.7557319e-06
      %v539 = vmul.f32 %v523, 2.7557319e-06
      %v540 = vsub.f32 %v524, 0.0001984127
      %v541 = vsub.f32 %v525, 0.0001984127
      %v542 = vsub.f32 %v526, 0.0001984127
      %v543 = vsub.f32 %v527, 0.0001984127
      %v544 = vsub.f32 %v528, 0.0001984127
      %v545 = vsub.f32 %v529, 0.0001984127
      %v546 = vsub.f32 %v530, 0.0001984127
      %v547 = vsub.f32 %v531, 0.0001984127
      %v548 = vsub.f32 %v532, 0.0001984127
      %v549 = vsub.f32 %v533, 0.0001984127
      %v550 = vsub.f32 %v534, 0.0001984127
      %v551 = vsub.f32 %v535, 0.0001984127
      %v552 = vsub.f32 %v536, 0.0001984127
      %v553 = vsub.f32 %v537, 0.0001984127
      %v554 = vsub.f32 %v538, 0.0001984127
      %v555 = vsub.f32 %v539, 0.0001984127
      %v556 = vmul.f32 %v540, %v508
      %v557 = vmul.f32 %v541, %v509
      %v558 = vmul.f32 %v542, %v510
      %v559 = vmul.f32 %v543, %v511
      %v560 = vmul.f32 %v544, %v512
      %v561 = vmul.f32 %v545, %v513
      %v562 = vmul.f32 %v546, %v514
      %v563 = vmul.f32 %v547, %v515
      %v564 = vmul.f32 %v548, %v516
      %v565 = vmul.f32 %v549, %v517
      %v566 = vmul.f32 %v550, %v518
      %v567 = vmul.f32 %v551, %v519
      %v568 = vmul.f32 %v552, %v520
      %v569 = vmul.f32 %v553, %v521
      %v570 = vmul.f32 %v554, %v522
      %v571 = vmul.f32 %v555, %v523
      %v572 = vadd.f32 %v556, 0.008333333
      %v573 = vadd.f32 %v557, 0.008333333
      %v574 = vadd.f32 %v558, 0.008333333
      %v575 = vadd.f32 %v559, 0.008333333
      %v576 = vadd.f32 %v560, 0.008333333
      %v577 = vadd.f32 %v561, 0.008333333
      %v578 = vadd.f32 %v562, 0.008333333
      %v579 = vadd.f32 %v563, 0.008333333
      %v580 = vadd.f32 %v564, 0.008333333
      %v581 = vadd.f32 %v565, 0.008333333
      %v582 = vadd.f32 %v566, 0.008333333
      %v583 = vadd.f32 %v567, 0.008333333
      %v584 = vadd.f32 %v568, 0.008333333
      %v585 = vadd.f32 %v569, 0.008333333
      %v586 = vadd.f32 %v570, 0.008333333
      %v587 = vadd.f32 %v571, 0.008333333
      %v588 = vmul.f32 %v572, %v508
      %v589 = vmul.f32 %v573, %v509
      %v590 = vmul.f32 %v574, %v510
      %v591 = vmul.f32 %v575, %v511
      %v592 = vmul.f32 %v576, %v512
      %v593 = vmul.f32 %v577, %v513
      %v594 = vmul.f32 %v578, %v514
      %v595 = vmul.f32 %v579, %v515
      %v596 = vmul.f32 %v580, %v516
      %v597 = vmul.f32 %v581, %v517
      %v598 = vmul.f32 %v582, %v518
      %v599 = vmul.f32 %v583, %v519
      %v600 = vmul.f32 %v584, %v520
      %v601 = vmul.f32 %v585, %v521
      %v602 = vmul.f32 %v586, %v522
      %v603 = vmul.f32 %v587, %v523
      %v604 = vsub.f32 %v588, 0.16666667
      %v605 = vsub.f32 %v589, 0.16666667
      %v606 = vsub.f32 %v590, 0.16666667
      %v607 = vsub.f32 %v591, 0.16666667
      %v608 = vsub.f32 %v592, 0.16666667
      %v609 = vsub.f32 %v593, 0.16666667
      %v610 = vsub.f32 %v594, 0.16666667
      %v611 = vsub.f32 %v595, 0.16666667
      %v612 = vsub.f32 %v596, 0.16666667
      %v613 = vsub.f32 %v597, 0.16666667
      %v614 = vsub.f32 %v598, 0.16666667
      %v615 = vsub.f32 %v599, 0.16666667
      %v616 = vsub.f32 %v600, 0.16666667
      %v617 = vsub.f32 %v601, 0.16666667
      %v618 = vsub.f32 %v602, 0.16666667
      %v619 = vsub.f32 %v603, 0.16666667
      %v620 = vmul.f32 %v396, %v508
      %v621 = vmul.f32 %v397, %v509
      %v622 = vmul.f32 %v398, %v510
      %v623 = vmul.f32 %v399, %v511
      %v624 = vmul.f32 %v400, %v512
      %v625 = vmul.f32 %v401, %v513
      %v626 = vmul.f32 %v402, %v514
      %v627 = vmul.f32 %v403, %v515
      %v628 = vmul.f32 %v404, %v516
      %v629 = vmul.f32 %v405, %v517
      %v630 = vmul.f32 %v406, %v518
      %v631 = vmul.f32 %v407, %v519
      %v632 = vmul.f32 %v408, %v520
      %v633 = vmul.f32 %v409, %v521
      %v634 = vmul.f32 %v410, %v522
      %v635 = vmul.f32 %v411, %v523
      %v636 = vmul.f32 %v620, %v604
      %v637 = vmul.f32 %v621, %v605
      %v638 = vmul.f32 %v622, %v606
      %v639 = vmul.f32 %v623, %v607
      %v640 = vmul.f32 %v624, %v608
      %v641 = vmul.f32 %v625, %v609
      %v642 = vmul.f32 %v626, %v610
      %v643 = vmul.f32 %v627, %v611
      %v644 = vmul.f32 %v628, %v612
      %v645 = vmul.f32 %v629, %v613
      %v646 = vmul.f32 %v630, %v614
      %v647 = vmul.f32 %v631, %v615
      %v648 = vmul.f32 %v632, %v616
      %v649 = vmul.f32 %v633, %v617
      %v650 = vmul.f32 %v634, %v618
      %v651 = vmul.f32 %v635, %v619
      %v652 = vadd.f32 %v396, %v636
      %v653 = vadd.f32 %v397, %v637
      %v654 = vadd.f32 %v398, %v638
      %v655 = vadd.f32 %v399, %v639
      %v656 = vadd.f32 %v400, %v640
      %v657 = vadd.f32 %v401, %v641
      %v658 = vadd.f32 %v402, %v642
      %v659 = vadd.f32 %v403, %v643
      %v660 = vadd.f32 %v404, %v644
      %v661 = vadd.f32 %v405, %v645
      %v662 = vadd.f32 %v406, %v646
      %v663 = vadd.f32 %v407, %v647
      %v664 = vadd.f32 %v408, %v648
      %v665 = vadd.f32 %v409, %v649
      %v666 = vadd.f32 %v410, %v650
      %v667 = vadd.f32 %v411, %v651
      %v668 = vmul.f32 %v492, %v652
      %v669 = vmul.f32 %v493, %v653
      %v670 = vmul.f32 %v494, %v654
      %v671 = vmul.f32 %v495, %v655
      %v672 = vmul.f32 %v496, %v656
      %v673 = vmul.f32 %v497, %v657
      %v674 = vmul.f32 %v498, %v658
      %v675 = vmul.f32 %v499, %v659
      %v676 = vmul.f32 %v500, %v660
      %v677 = vmul.f32 %v501, %v661
      %v678 = vmul.f32 %v502, %v662
      %v679 = vmul.f32 %v503, %v663
      %v680 = vmul.f32 %v504, %v664
      %v681 = vmul.f32 %v505, %v665
      %v682 = vmul.f32 %v506, %v666
      %v683 = vmul.f32 %v507, %v667
      %s684 = smul.u32 %s172, 32
      %s685 = smul.addr %s684, 8
      %s686 = scalar_lea.vmem [#allocation11], %s685
      %687 = vst [vmem:[%s686] sm:$0xff] %v668
      %688 = vst [vmem:[%s686 + $0x8] sm:$0xff] %v669
      %689 = vst [vmem:[%s686 + $0x10] sm:$0xff] %v670
      %690 = vst [vmem:[%s686 + $0x18] sm:$0xff] %v671
      %691 = vst [vmem:[%s686 + $0x20] sm:$0xff] %v672
      %692 = vst [vmem:[%s686 + $0x28] sm:$0xff] %v673
      %693 = vst [vmem:[%s686 + $0x30] sm:$0xff] %v674
      %694 = vst [vmem:[%s686 + $0x38] sm:$0xff] %v675
      %695 = vst [vmem:[%s686 + $0x40] sm:$0xff] %v676
      %696 = vst [vmem:[%s686 + $0x48] sm:$0xff] %v677
      %697 = vst [vmem:[%s686 + $0x50] sm:$0xff] %v678
      %698 = vst [vmem:[%s686 + $0x58] sm:$0xff] %v679
      %699 = vst [vmem:[%s686 + $0x60] sm:$0xff] %v680
      %700 = vst [vmem:[%s686 + $0x68] sm:$0xff] %v681
      %701 = vst [vmem:[%s686 + $0x70] sm:$0xff] %v682
      %702 = vst [vmem:[%s686 + $0x78] sm:$0xff] %v683
      %v703 = vld [vmem:[%s179] sm:$0xf]
      %v704 = vld [vmem:[%s179 + $0x4] sm:$0xf]
      %v705 = vld [vmem:[#allocation7] sm:$0xff]
      %v706 = vld [vmem:[#allocation7 + $0x8] sm:$0xff]
      %v709 = vunpack.c.l.b16 %v703
      %v710 = vunpack.c.l.b16 %v704
      %v711 = vpack.c.b16 %v710, %v709
      %v714 = vunpack.c.l.b16 %v705
      %v715 = vunpack.c.h.b16 %v705
      %v716 = vunpack.c.l.b16 %v706
      %v717 = vunpack.c.h.b16 %v706
      %v718 = vpack.c.b16 %v716, %v714
      %v719 = vpack.c.b16 %v717, %v715
      %v723 = vsel %vm199, %v711, 0
      %725 = vmatprep.subr.bf16.mxu0 %v719
      %726 = vmatpush1.bf16.msra.mxu0 %v718
      %727 = vmatprep.subr.bf16.mxu0 0
      %728 = vmatpush1.bf16.msra.mxu0 0
      %729 = vmatprep.subr.bf16.mxu0 0
      %730 = vmatpush1.bf16.msra.mxu0 0
      %731 = vmatprep.subr.bf16.mxu0 0
      %732 = vmatpush1.bf16.msra.mxu0 0
      %733 = vmatprep.subr.bf16.mxu0 0
      %734 = vmatpush1.bf16.msra.mxu0 0
      %735 = vmatprep.subr.bf16.mxu0 0
      %736 = vmatpush1.bf16.msra.mxu0 0
      %737 = vmatprep.subr.bf16.mxu0 0
      %738 = vmatpush1.bf16.msra.mxu0 0
      %739 = vmatprep.subr.bf16.mxu0 0
      %740 = vmatpush1.bf16.msra.mxu0 0
      %741 = vmatprep.subr.bf16.mxu0 0
      %742 = vmatpush1.bf16.msra.mxu0 0
      %743 = vmatprep.subr.bf16.mxu0 0
      %744 = vmatpush1.bf16.msra.mxu0 0
      %745 = vmatprep.subr.bf16.mxu0 0
      %746 = vmatpush1.bf16.msra.mxu0 0
      %747 = vmatprep.subr.bf16.mxu0 0
      %748 = vmatpush1.bf16.msra.mxu0 0
      %749 = vmatprep.subr.bf16.mxu0 0
      %750 = vmatpush1.bf16.msra.mxu0 0
      %751 = vmatprep.subr.bf16.mxu0 0
      %752 = vmatpush1.bf16.msra.mxu0 0
      %753 = vmatprep.subr.bf16.mxu0 0
      %754 = vmatpush1.bf16.msra.mxu0 0
      %755 = vmatprep.subr.bf16.mxu0 0
      %756 = vmatpush1.bf16.msra.mxu0 0
      %757 = vmatprep.mubr.bf16.mxu0 0
      %758 = vmatmul.mubr.bf16.gmra.mrb[0].mxu0 %v723
      %v759 = vpop.f32.mrb[0].mxu0
      %v760 = vadd.f32 0.0, %v759
      %v761 = vpop.f32.mrb[0].mxu0
      %v762 = vadd.f32 0.0, %v761
      %v763 = vpop.f32.mrb[0].mxu0
      %v764 = vadd.f32 0.0, %v763
      %v765 = vpop.f32.mrb[0].mxu0
      %v766 = vadd.f32 0.0, %v765
      %767 = vdwg.mxu0
      %v768 = vld [vmem:[#allocation10] sm:$0xff]
      %v769 = vld [vmem:[#allocation10 + $0x8] sm:$0xff]
      %v770 = vld [vmem:[#allocation10 + $0x10] sm:$0xff]
      %v771 = vld [vmem:[#allocation10 + $0x18] sm:$0xff]
      %v772 = vmul.f32 %v760, %v768
      %v773 = vmul.f32 %v762, %v769
      %v774 = vmul.f32 %v764, %v770
      %v775 = vmul.f32 %v766, %v771
      %v776 = vadd.f32 %v772, %v774
      %v777 = vrot.slane %v776, 4
      %v778 = vadd.f32 %v776, %v777
      %v779 = vrot.slane %v778, 2
      %v780 = vadd.f32 %v778, %v779
      %v781 = vrot.slane %v780, 1
      %v782 = vadd.f32 %v780, %v781
      %v783 = vadd.f32 %v773, %v775
      %v784 = vrot.slane %v783, 4
      %v785 = vadd.f32 %v783, %v784
      %v786 = vrot.slane %v785, 2
      %v787 = vadd.f32 %v785, %v786
      %v788 = vrot.slane %v787, 1
      %v789 = vadd.f32 %v787, %v788
      %v790 = vmul.f32 %v782, %v132
      %v791 = vmul.f32 %v789, %v132
      %v792 = vmul.f32 %v782, %v134
      %v793 = vmul.f32 %v789, %v134
      %v794 = vmul.f32 %v782, %v136
      %v795 = vmul.f32 %v789, %v136
      %v796 = vmul.f32 %v782, %v138
      %v797 = vmul.f32 %v789, %v138
      %v798 = vmul.f32 %v782, %v140
      %v799 = vmul.f32 %v789, %v140
      %v800 = vmul.f32 %v782, %v142
      %v801 = vmul.f32 %v789, %v142
      %v802 = vmul.f32 %v782, %v144
      %v803 = vmul.f32 %v789, %v144
      %v804 = vmul.f32 %v782, %v146
      %v805 = vmul.f32 %v789, %v146
      %v806 = vadd.f32 %v790, %v163
      %v807 = vadd.f32 %v791, %v163
      %v808 = vadd.f32 %v792, %v164
      %v809 = vadd.f32 %v793, %v164
      %v810 = vadd.f32 %v794, %v165
      %v811 = vadd.f32 %v795, %v165
      %v812 = vadd.f32 %v796, %v166
      %v813 = vadd.f32 %v797, %v166
      %v814 = vadd.f32 %v798, %v167
      %v815 = vadd.f32 %v799, %v167
      %v816 = vadd.f32 %v800, %v168
      %v817 = vadd.f32 %v801, %v168
      %v818 = vadd.f32 %v802, %v169
      %v819 = vadd.f32 %v803, %v169
      %v820 = vadd.f32 %v804, %v170
      %v821 = vadd.f32 %v805, %v170
      %v822 = vmul.f32 %v806, 0.31830987
      %v823 = vmul.f32 %v807, 0.31830987
      %v824 = vmul.f32 %v808, 0.31830987
      %v825 = vmul.f32 %v809, 0.31830987
      %v826 = vmul.f32 %v810, 0.31830987
      %v827 = vmul.f32 %v811, 0.31830987
      %v828 = vmul.f32 %v812, 0.31830987
      %v829 = vmul.f32 %v813, 0.31830987
      %v830 = vmul.f32 %v814, 0.31830987
      %v831 = vmul.f32 %v815, 0.31830987
      %v832 = vmul.f32 %v816, 0.31830987
      %v833 = vmul.f32 %v817, 0.31830987
      %v834 = vmul.f32 %v818, 0.31830987
      %v835 = vmul.f32 %v819, 0.31830987
      %v836 = vmul.f32 %v820, 0.31830987
      %v837 = vmul.f32 %v821, 0.31830987
      %v838 = vadd.f32 %v822, 0.5
      %v839 = vadd.f32 %v823, 0.5
      %v840 = vadd.f32 %v824, 0.5
      %v841 = vadd.f32 %v825, 0.5
      %v842 = vadd.f32 %v826, 0.5
      %v843 = vadd.f32 %v827, 0.5
      %v844 = vadd.f32 %v828, 0.5
      %v845 = vadd.f32 %v829, 0.5
      %v846 = vadd.f32 %v830, 0.5
      %v847 = vadd.f32 %v831, 0.5
      %v848 = vadd.f32 %v832, 0.5
      %v849 = vadd.f32 %v833, 0.5
      %v850 = vadd.f32 %v834, 0.5
      %v851 = vadd.f32 %v835, 0.5
      %v852 = vadd.f32 %v836, 0.5
      %v853 = vadd.f32 %v837, 0.5
      %v854 = vfloor.f32 %v838
      %v855 = vfloor.f32 %v839
      %v856 = vfloor.f32 %v840
      %v857 = vfloor.f32 %v841
      %v858 = vfloor.f32 %v842
      %v859 = vfloor.f32 %v843
      %v860 = vfloor.f32 %v844
      %v861 = vfloor.f32 %v845
      %v862 = vfloor.f32 %v846
      %v863 = vfloor.f32 %v847
      %v864 = vfloor.f32 %v848
      %v865 = vfloor.f32 %v849
      %v866 = vfloor.f32 %v850
      %v867 = vfloor.f32 %v851
      %v868 = vfloor.f32 %v852
      %v869 = vfloor.f32 %v853
      %v870 = vmul.f32 %v854, 3.140625
      %v871 = vmul.f32 %v855, 3.140625
      %v872 = vmul.f32 %v856, 3.140625
      %v873 = vmul.f32 %v857, 3.140625
      %v874 = vmul.f32 %v858, 3.140625
      %v875 = vmul.f32 %v859, 3.140625
      %v876 = vmul.f32 %v860, 3.140625
      %v877 = vmul.f32 %v861, 3.140625
      %v878 = vmul.f32 %v862, 3.140625
      %v879 = vmul.f32 %v863, 3.140625
      %v880 = vmul.f32 %v864, 3.140625
      %v881 = vmul.f32 %v865, 3.140625
      %v882 = vmul.f32 %v866, 3.140625
      %v883 = vmul.f32 %v867, 3.140625
      %v884 = vmul.f32 %v868, 3.140625
      %v885 = vmul.f32 %v869, 3.140625
      %v886 = vsub.f32 %v806, %v870
      %v887 = vsub.f32 %v807, %v871
      %v888 = vsub.f32 %v808, %v872
      %v889 = vsub.f32 %v809, %v873
      %v890 = vsub.f32 %v810, %v874
      %v891 = vsub.f32 %v811, %v875
      %v892 = vsub.f32 %v812, %v876
      %v893 = vsub.f32 %v813, %v877
      %v894 = vsub.f32 %v814, %v878
      %v895 = vsub.f32 %v815, %v879
      %v896 = vsub.f32 %v816, %v880
      %v897 = vsub.f32 %v817, %v881
      %v898 = vsub.f32 %v818, %v882
      %v899 = vsub.f32 %v819, %v883
      %v900 = vsub.f32 %v820, %v884
      %v901 = vsub.f32 %v821, %v885
      %v902 = vmul.f32 %v854, 0.0009676536
      %v903 = vmul.f32 %v855, 0.0009676536
      %v904 = vmul.f32 %v856, 0.0009676536
      %v905 = vmul.f32 %v857, 0.0009676536
      %v906 = vmul.f32 %v858, 0.0009676536
      %v907 = vmul.f32 %v859, 0.0009676536
      %v908 = vmul.f32 %v860, 0.0009676536
      %v909 = vmul.f32 %v861, 0.0009676536
      %v910 = vmul.f32 %v862, 0.0009676536
      %v911 = vmul.f32 %v863, 0.0009676536
      %v912 = vmul.f32 %v864, 0.0009676536
      %v913 = vmul.f32 %v865, 0.0009676536
      %v914 = vmul.f32 %v866, 0.0009676536
      %v915 = vmul.f32 %v867, 0.0009676536
      %v916 = vmul.f32 %v868, 0.0009676536
      %v917 = vmul.f32 %v869, 0.0009676536
      %v918 = vsub.f32 %v886, %v902
      %v919 = vsub.f32 %v887, %v903
      %v920 = vsub.f32 %v888, %v904
      %v921 = vsub.f32 %v889, %v905
      %v922 = vsub.f32 %v890, %v906
      %v923 = vsub.f32 %v891, %v907
      %v924 = vsub.f32 %v892, %v908
      %v925 = vsub.f32 %v893, %v909
      %v926 = vsub.f32 %v894, %v910
      %v927 = vsub.f32 %v895, %v911
      %v928 = vsub.f32 %v896, %v912
      %v929 = vsub.f32 %v897, %v913
      %v930 = vsub.f32 %v898, %v914
      %v931 = vsub.f32 %v899, %v915
      %v932 = vsub.f32 %v900, %v916
      %v933 = vsub.f32 %v901, %v917
      %v934 = vmul.f32 %v854, 0.5
      %v935 = vmul.f32 %v855, 0.5
      %v936 = vmul.f32 %v856, 0.5
      %v937 = vmul.f32 %v857, 0.5
      %v938 = vmul.f32 %v858, 0.5
      %v939 = vmul.f32 %v859, 0.5
      %v940 = vmul.f32 %v860, 0.5
      %v941 = vmul.f32 %v861, 0.5
      %v942 = vmul.f32 %v862, 0.5
      %v943 = vmul.f32 %v863, 0.5
      %v944 = vmul.f32 %v864, 0.5
      %v945 = vmul.f32 %v865, 0.5
      %v946 = vmul.f32 %v866, 0.5
      %v947 = vmul.f32 %v867, 0.5
      %v948 = vmul.f32 %v868, 0.5
      %v949 = vmul.f32 %v869, 0.5
      %v950 = vfloor.f32 %v934
      %v951 = vfloor.f32 %v935
      %v952 = vfloor.f32 %v936
      %v953 = vfloor.f32 %v937
      %v954 = vfloor.f32 %v938
      %v955 = vfloor.f32 %v939
      %v956 = vfloor.f32 %v940
      %v957 = vfloor.f32 %v941
      %v958 = vfloor.f32 %v942
      %v959 = vfloor.f32 %v943
      %v960 = vfloor.f32 %v944
      %v961 = vfloor.f32 %v945
      %v962 = vfloor.f32 %v946
      %v963 = vfloor.f32 %v947
      %v964 = vfloor.f32 %v948
      %v965 = vfloor.f32 %v949
      %v966 = vmul.f32 %v950, 2.0
      %v967 = vmul.f32 %v951, 2.0
      %v968 = vmul.f32 %v952, 2.0
      %v969 = vmul.f32 %v953, 2.0
      %v970 = vmul.f32 %v954, 2.0
      %v971 = vmul.f32 %v955, 2.0
      %v972 = vmul.f32 %v956, 2.0
      %v973 = vmul.f32 %v957, 2.0
      %v974 = vmul.f32 %v958, 2.0
      %v975 = vmul.f32 %v959, 2.0
      %v976 = vmul.f32 %v960, 2.0
      %v977 = vmul.f32 %v961, 2.0
      %v978 = vmul.f32 %v962, 2.0
      %v979 = vmul.f32 %v963, 2.0
      %v980 = vmul.f32 %v964, 2.0
      %v981 = vmul.f32 %v965, 2.0
      %v982 = vsub.f32 %v854, %v966
      %v983 = vsub.f32 %v855, %v967
      %v984 = vsub.f32 %v856, %v968
      %v985 = vsub.f32 %v857, %v969
      %v986 = vsub.f32 %v858, %v970
      %v987 = vsub.f32 %v859, %v971
      %v988 = vsub.f32 %v860, %v972
      %v989 = vsub.f32 %v861, %v973
      %v990 = vsub.f32 %v862, %v974
      %v991 = vsub.f32 %v863, %v975
      %v992 = vsub.f32 %v864, %v976
      %v993 = vsub.f32 %v865, %v977
      %v994 = vsub.f32 %v866, %v978
      %v995 = vsub.f32 %v867, %v979
      %v996 = vsub.f32 %v868, %v980
      %v997 = vsub.f32 %v869, %v981
      %v998 = vmul.f32 %v982, 2.0
      %v999 = vmul.f32 %v983, 2.0
      %v1000 = vmul.f32 %v984, 2.0
      %v1001 = vmul.f32 %v985, 2.0
      %v1002 = vmul.f32 %v986, 2.0
      %v1003 = vmul.f32 %v987, 2.0
      %v1004 = vmul.f32 %v988, 2.0
      %v1005 = vmul.f32 %v989, 2.0
      %v1006 = vmul.f32 %v990, 2.0
      %v1007 = vmul.f32 %v991, 2.0
      %v1008 = vmul.f32 %v992, 2.0
      %v1009 = vmul.f32 %v993, 2.0
      %v1010 = vmul.f32 %v994, 2.0
      %v1011 = vmul.f32 %v995, 2.0
      %v1012 = vmul.f32 %v996, 2.0
      %v1013 = vmul.f32 %v997, 2.0
      %v1014 = vsub.f32 1.0, %v998
      %v1015 = vsub.f32 1.0, %v999
      %v1016 = vsub.f32 1.0, %v1000
      %v1017 = vsub.f32 1.0, %v1001
      %v1018 = vsub.f32 1.0, %v1002
      %v1019 = vsub.f32 1.0, %v1003
      %v1020 = vsub.f32 1.0, %v1004
      %v1021 = vsub.f32 1.0, %v1005
      %v1022 = vsub.f32 1.0, %v1006
      %v1023 = vsub.f32 1.0, %v1007
      %v1024 = vsub.f32 1.0, %v1008
      %v1025 = vsub.f32 1.0, %v1009
      %v1026 = vsub.f32 1.0, %v1010
      %v1027 = vsub.f32 1.0, %v1011
      %v1028 = vsub.f32 1.0, %v1012
      %v1029 = vsub.f32 1.0, %v1013
      %v1030 = vmul.f32 %v918, %v918
      %v1031 = vmul.f32 %v919, %v919
      %v1032 = vmul.f32 %v920, %v920
      %v1033 = vmul.f32 %v921, %v921
      %v1034 = vmul.f32 %v922, %v922
      %v1035 = vmul.f32 %v923, %v923
      %v1036 = vmul.f32 %v924, %v924
      %v1037 = vmul.f32 %v925, %v925
      %v1038 = vmul.f32 %v926, %v926
      %v1039 = vmul.f32 %v927, %v927
      %v1040 = vmul.f32 %v928, %v928
      %v1041 = vmul.f32 %v929, %v929
      %v1042 = vmul.f32 %v930, %v930
      %v1043 = vmul.f32 %v931, %v931
      %v1044 = vmul.f32 %v932, %v932
      %v1045 = vmul.f32 %v933, %v933
      %v1046 = vmul.f32 %v1030, 2.7557319e-06
      %v1047 = vmul.f32 %v1031, 2.7557319e-06
      %v1048 = vmul.f32 %v1032, 2.7557319e-06
      %v1049 = vmul.f32 %v1033, 2.7557319e-06
      %v1050 = vmul.f32 %v1034, 2.7557319e-06
      %v1051 = vmul.f32 %v1035, 2.7557319e-06
      %v1052 = vmul.f32 %v1036, 2.7557319e-06
      %v1053 = vmul.f32 %v1037, 2.7557319e-06
      %v1054 = vmul.f32 %v1038, 2.7557319e-06
      %v1055 = vmul.f32 %v1039, 2.7557319e-06
      %v1056 = vmul.f32 %v1040, 2.7557319e-06
      %v1057 = vmul.f32 %v1041, 2.7557319e-06
      %v1058 = vmul.f32 %v1042, 2.7557319e-06
      %v1059 = vmul.f32 %v1043, 2.7557319e-06
      %v1060 = vmul.f32 %v1044, 2.7557319e-06
      %v1061 = vmul.f32 %v1045, 2.7557319e-06
      %v1062 = vsub.f32 %v1046, 0.0001984127
      %v1063 = vsub.f32 %v1047, 0.0001984127
      %v1064 = vsub.f32 %v1048, 0.0001984127
      %v1065 = vsub.f32 %v1049, 0.0001984127
      %v1066 = vsub.f32 %v1050, 0.0001984127
      %v1067 = vsub.f32 %v1051, 0.0001984127
      %v1068 = vsub.f32 %v1052, 0.0001984127
      %v1069 = vsub.f32 %v1053, 0.0001984127
      %v1070 = vsub.f32 %v1054, 0.0001984127
      %v1071 = vsub.f32 %v1055, 0.0001984127
      %v1072 = vsub.f32 %v1056, 0.0001984127
      %v1073 = vsub.f32 %v1057, 0.0001984127
      %v1074 = vsub.f32 %v1058, 0.0001984127
      %v1075 = vsub.f32 %v1059, 0.0001984127
      %v1076 = vsub.f32 %v1060, 0.0001984127
      %v1077 = vsub.f32 %v1061, 0.0001984127
      %v1078 = vmul.f32 %v1062, %v1030
      %v1079 = vmul.f32 %v1063, %v1031
      %v1080 = vmul.f32 %v1064, %v1032
      %v1081 = vmul.f32 %v1065, %v1033
      %v1082 = vmul.f32 %v1066, %v1034
      %v1083 = vmul.f32 %v1067, %v1035
      %v1084 = vmul.f32 %v1068, %v1036
      %v1085 = vmul.f32 %v1069, %v1037
      %v1086 = vmul.f32 %v1070, %v1038
      %v1087 = vmul.f32 %v1071, %v1039
      %v1088 = vmul.f32 %v1072, %v1040
      %v1089 = vmul.f32 %v1073, %v1041
      %v1090 = vmul.f32 %v1074, %v1042
      %v1091 = vmul.f32 %v1075, %v1043
      %v1092 = vmul.f32 %v1076, %v1044
      %v1093 = vmul.f32 %v1077, %v1045
      %v1094 = vadd.f32 %v1078, 0.008333333
      %v1095 = vadd.f32 %v1079, 0.008333333
      %v1096 = vadd.f32 %v1080, 0.008333333
      %v1097 = vadd.f32 %v1081, 0.008333333
      %v1098 = vadd.f32 %v1082, 0.008333333
      %v1099 = vadd.f32 %v1083, 0.008333333
      %v1100 = vadd.f32 %v1084, 0.008333333
      %v1101 = vadd.f32 %v1085, 0.008333333
      %v1102 = vadd.f32 %v1086, 0.008333333
      %v1103 = vadd.f32 %v1087, 0.008333333
      %v1104 = vadd.f32 %v1088, 0.008333333
      %v1105 = vadd.f32 %v1089, 0.008333333
      %v1106 = vadd.f32 %v1090, 0.008333333
      %v1107 = vadd.f32 %v1091, 0.008333333
      %v1108 = vadd.f32 %v1092, 0.008333333
      %v1109 = vadd.f32 %v1093, 0.008333333
      %v1110 = vmul.f32 %v1094, %v1030
      %v1111 = vmul.f32 %v1095, %v1031
      %v1112 = vmul.f32 %v1096, %v1032
      %v1113 = vmul.f32 %v1097, %v1033
      %v1114 = vmul.f32 %v1098, %v1034
      %v1115 = vmul.f32 %v1099, %v1035
      %v1116 = vmul.f32 %v1100, %v1036
      %v1117 = vmul.f32 %v1101, %v1037
      %v1118 = vmul.f32 %v1102, %v1038
      %v1119 = vmul.f32 %v1103, %v1039
      %v1120 = vmul.f32 %v1104, %v1040
      %v1121 = vmul.f32 %v1105, %v1041
      %v1122 = vmul.f32 %v1106, %v1042
      %v1123 = vmul.f32 %v1107, %v1043
      %v1124 = vmul.f32 %v1108, %v1044
      %v1125 = vmul.f32 %v1109, %v1045
      %v1126 = vsub.f32 %v1110, 0.16666667
      %v1127 = vsub.f32 %v1111, 0.16666667
      %v1128 = vsub.f32 %v1112, 0.16666667
      %v1129 = vsub.f32 %v1113, 0.16666667
      %v1130 = vsub.f32 %v1114, 0.16666667
      %v1131 = vsub.f32 %v1115, 0.16666667
      %v1132 = vsub.f32 %v1116, 0.16666667
      %v1133 = vsub.f32 %v1117, 0.16666667
      %v1134 = vsub.f32 %v1118, 0.16666667
      %v1135 = vsub.f32 %v1119, 0.16666667
      %v1136 = vsub.f32 %v1120, 0.16666667
      %v1137 = vsub.f32 %v1121, 0.16666667
      %v1138 = vsub.f32 %v1122, 0.16666667
      %v1139 = vsub.f32 %v1123, 0.16666667
      %v1140 = vsub.f32 %v1124, 0.16666667
      %v1141 = vsub.f32 %v1125, 0.16666667
      %v1142 = vmul.f32 %v918, %v1030
      %v1143 = vmul.f32 %v919, %v1031
      %v1144 = vmul.f32 %v920, %v1032
      %v1145 = vmul.f32 %v921, %v1033
      %v1146 = vmul.f32 %v922, %v1034
      %v1147 = vmul.f32 %v923, %v1035
      %v1148 = vmul.f32 %v924, %v1036
      %v1149 = vmul.f32 %v925, %v1037
      %v1150 = vmul.f32 %v926, %v1038
      %v1151 = vmul.f32 %v927, %v1039
      %v1152 = vmul.f32 %v928, %v1040
      %v1153 = vmul.f32 %v929, %v1041
      %v1154 = vmul.f32 %v930, %v1042
      %v1155 = vmul.f32 %v931, %v1043
      %v1156 = vmul.f32 %v932, %v1044
      %v1157 = vmul.f32 %v933, %v1045
      %v1158 = vmul.f32 %v1142, %v1126
      %v1159 = vmul.f32 %v1143, %v1127
      %v1160 = vmul.f32 %v1144, %v1128
      %v1161 = vmul.f32 %v1145, %v1129
      %v1162 = vmul.f32 %v1146, %v1130
      %v1163 = vmul.f32 %v1147, %v1131
      %v1164 = vmul.f32 %v1148, %v1132
      %v1165 = vmul.f32 %v1149, %v1133
      %v1166 = vmul.f32 %v1150, %v1134
      %v1167 = vmul.f32 %v1151, %v1135
      %v1168 = vmul.f32 %v1152, %v1136
      %v1169 = vmul.f32 %v1153, %v1137
      %v1170 = vmul.f32 %v1154, %v1138
      %v1171 = vmul.f32 %v1155, %v1139
      %v1172 = vmul.f32 %v1156, %v1140
      %v1173 = vmul.f32 %v1157, %v1141
      %v1174 = vadd.f32 %v918, %v1158
      %v1175 = vadd.f32 %v919, %v1159
      %v1176 = vadd.f32 %v920, %v1160
      %v1177 = vadd.f32 %v921, %v1161
      %v1178 = vadd.f32 %v922, %v1162
      %v1179 = vadd.f32 %v923, %v1163
      %v1180 = vadd.f32 %v924, %v1164
      %v1181 = vadd.f32 %v925, %v1165
      %v1182 = vadd.f32 %v926, %v1166
      %v1183 = vadd.f32 %v927, %v1167
      %v1184 = vadd.f32 %v928, %v1168
      %v1185 = vadd.f32 %v929, %v1169
      %v1186 = vadd.f32 %v930, %v1170
      %v1187 = vadd.f32 %v931, %v1171
      %v1188 = vadd.f32 %v932, %v1172
      %v1189 = vadd.f32 %v933, %v1173
      %v1190 = vmul.f32 %v1014, %v1174
      %v1191 = vmul.f32 %v1015, %v1175
      %v1192 = vmul.f32 %v1016, %v1176
      %v1193 = vmul.f32 %v1017, %v1177
      %v1194 = vmul.f32 %v1018, %v1178
      %v1195 = vmul.f32 %v1019, %v1179
      %v1196 = vmul.f32 %v1020, %v1180
      %v1197 = vmul.f32 %v1021, %v1181
      %v1198 = vmul.f32 %v1022, %v1182
      %v1199 = vmul.f32 %v1023, %v1183
      %v1200 = vmul.f32 %v1024, %v1184
      %v1201 = vmul.f32 %v1025, %v1185
      %v1202 = vmul.f32 %v1026, %v1186
      %v1203 = vmul.f32 %v1027, %v1187
      %v1204 = vmul.f32 %v1028, %v1188
      %v1205 = vmul.f32 %v1029, %v1189
      %1206 = vst [vmem:[%s686 + $0x80] sm:$0xff] %v1190
      %1207 = vst [vmem:[%s686 + $0x88] sm:$0xff] %v1191
      %1208 = vst [vmem:[%s686 + $0x90] sm:$0xff] %v1192
      %1209 = vst [vmem:[%s686 + $0x98] sm:$0xff] %v1193
      %1210 = vst [vmem:[%s686 + $0xa0] sm:$0xff] %v1194
      %1211 = vst [vmem:[%s686 + $0xa8] sm:$0xff] %v1195
      %1212 = vst [vmem:[%s686 + $0xb0] sm:$0xff] %v1196
      %1213 = vst [vmem:[%s686 + $0xb8] sm:$0xff] %v1197
      %1214 = vst [vmem:[%s686 + $0xc0] sm:$0xff] %v1198
      %1215 = vst [vmem:[%s686 + $0xc8] sm:$0xff] %v1199
      %1216 = vst [vmem:[%s686 + $0xd0] sm:$0xff] %v1200
      %1217 = vst [vmem:[%s686 + $0xd8] sm:$0xff] %v1201
      %1218 = vst [vmem:[%s686 + $0xe0] sm:$0xff] %v1202
      %1219 = vst [vmem:[%s686 + $0xe8] sm:$0xff] %v1203
      %1220 = vst [vmem:[%s686 + $0xf0] sm:$0xff] %v1204
      %1221 = vst [vmem:[%s686 + $0xf8] sm:$0xff] %v1205
    $region46: #{tpu_custom_call.1} parent=1 // loop_footer
      %s176 = sadd.s32 1, %s172
    $region47: #{tpu_custom_call.1} parent=1 // loop_footer_branch
      %171 = sbr.rel target = $region43
    $region48: #{tpu_custom_call.1} parent=1 // loop_exit
      _
    // Predicated region
    $region49: #{tpu_custom_call.1} parent=1 // pred_check
      _
    $region50: #{tpu_custom_call.1} parent=1 // pred_check_branch
      %1223 = sbr.rel (0) target = $region52
    $region51: #{tpu_custom_call.1} parent=1 // pred_region
      %s1225 = ssub.s32 8192, 8192
      %1226 = vsyncadd [#allocation4], %s1225
      %s1227 = sshll.u32 [#allocation11], 4
      %s1228 = int_to_ptr.vmem [resolvable:$true] %s1227
      %1233 = dma.vmem_to_hbm [thread:$0]  %s1228, 8192, %s5, [#allocation4], 256, 256, 16
    $region52: #{tpu_custom_call.1} parent=1 // pred_fallthru
      _
    // Predicated region
    $region53: #{tpu_custom_call.1} parent=1 // pred_check
      _
    $region54: #{tpu_custom_call.1} parent=1 // pred_check_branch
      %1235 = sbr.rel (0) target = $region56
    $region55: #{tpu_custom_call.1} parent=1 // pred_region
      %1236 = dma.done [#allocation4], 8192
    $region56: #{tpu_custom_call.1} parent=1 // pred_fallthru
      _
    %1237 = vsyncpa [#allocation3], 1
    %1238 = vsyncpa [#allocation6], 1
    %1239 = vsyncpa [#allocation9], 1
    %1240 = vsyncpa [#allocation4], 1

</llo_original>
